<compile_context>
chip_gen: v7x
topology: tpu7x:2x2x1
jax: 0.10.0
libtpu: 0.0.40
codegen_flags: <defaults>
</compile_context>

<pallas_src>
import jax
import jax.numpy as jnp
from jax.experimental import pallas as pl
from jax.experimental.pallas import tpu as pltpu


# ------------------------------------------------------------------ the kernel
def _net_fused_kernel(x_ref, w1_ref, b1_ref, w2_ref, b2_ref, wfc_ref, bfc_ref,
                      out_ref):
    f32 = jnp.float32
    TB = x_ref.shape[1]                      # batch tile (multiple of 8)

    xc = x_ref[...]                          # [24, TB, 140]  (h', b, 5 H-taps x 28)
    w1 = w1_ref[...]                         # [140, 256]
    w2 = w2_ref[...]                         # [5, 128, 256]
    wfc = wfc_ref[...]                       # [4, 128, 128]

    # ---- conv1: single fused-tap MXU dot (K = 5 taps * 28 = 140) -----------
    # output cols: parity*128 + cout*12 + w''  (even/odd conv columns)
    y1 = jnp.dot(xc.reshape(24 * TB, 140), w1, preferred_element_type=f32)

    # ---- 2x2 maxpool (H: outer-dim max, W: aligned lane max) + bias + relu --
    t = y1.reshape(12, 2, TB, 256)
    y1 = jnp.maximum(t[:, 0], t[:, 1]).reshape(12 * TB, 256)
    a1 = jnp.maximum(y1[:, :128], y1[:, 128:])          # VPU, no MXU
    a1 = jnp.maximum(a1 + b1_ref[...], 0.0).reshape(12, TB, 128)

    # ---- conv2: 5 row-tap dots, K = 128 (exact lane tile) -------------------
    y2 = jnp.dot(a1[0:8].reshape(8 * TB, 128), w2[0], preferred_element_type=f32)
    for i in range(1, 5):
        y2 = y2 + jnp.dot(a1[i:i + 8].reshape(8 * TB, 128), w2[i],
                          preferred_element_type=f32)

    t = y2.reshape(4, 2, TB, 256)
    y2 = jnp.maximum(t[:, 0], t[:, 1]).reshape(4 * TB, 256)
    a2 = jnp.maximum(y2[:, :128], y2[:, 128:])
    a2 = jnp.maximum(a2 + b2_ref[...], 0.0).reshape(4, TB, 128)

    # ---- fc (320 -> 10, lane-padded to 128) + log_softmax -------------------
    # pad lanes get bias -1e30 -> exp()==0, so they never pollute max/lse.
    logits = jnp.dot(a2[0], wfc[0], preferred_element_type=f32)
    for h in range(1, 4):
        logits = logits + jnp.dot(a2[h], wfc[h], preferred_element_type=f32)
    logits = logits + bfc_ref[...]           # [TB, 128]

    zmax = jnp.max(logits, axis=-1, keepdims=True)
    z = logits - zmax
    lse = jnp.log(jnp.sum(jnp.exp(z), axis=-1, keepdims=True))
    out_ref[...] = z - lse                   # lane-dense 128-wide store


# ------------------------------------------------------------- weight plumbing
def _prep_params(params):
    """One-time (fused into the jit) repacking of torch-layout weights into the
    banded, parity-major, 128-lane-padded matrices the fused kernel consumes."""
    f32 = jnp.float32
    w1 = params["w1"].astype(f32)            # [10, 1, 5, 5]
    b1 = params["b1"].astype(f32)            # [10]
    w2 = params["w2"].astype(f32)            # [20, 10, 5, 5]
    b2 = params["b2"].astype(f32)            # [20]
    wfc = params["wfc"].astype(f32)          # [10, 320]
    bfc = params["bfc"].astype(f32)          # [10]

    # conv1 banded weights, H-taps fused along K, parity-major output columns:
    #   W1cat[i*28 + l, p*128 + co*12 + w''] = w1[co,0,i, l - (2*w''+p)]  (valid)
    l = jnp.arange(28)
    wp1 = 2 * jnp.arange(12)[None, :] + jnp.arange(2)[:, None]      # [2, 12]
    j = l[:, None, None] - wp1[None]                                # [28, 2, 12]
    valid1 = (j >= 0) & (j < 5)
    w1g = w1[:, 0][:, :, jnp.clip(j, 0, 4)] * valid1[None, None].astype(f32)
    # [co, i, l, p, w''] -> [i, l, p, co, w'']
    W1cat = w1g.transpose(1, 2, 3, 0, 4).reshape(5, 28, 2, 120)
    W1cat = jnp.pad(W1cat, ((0, 0), (0, 0), (0, 0), (0, 8)))        # pad 120->128
    W1cat = W1cat.reshape(5, 28, 256).reshape(140, 256)
    b1row = jnp.pad(jnp.repeat(b1, 12), (0, 8))[None, :]            # [1, 128] pooled bias

    # conv2 banded weights: K = cin*12 + w (padded 120->128), parity-major cols:
    #   W2rows[i, ci*12 + w, p*128 + co*4 + w'''] = w2[co,ci,i, w - (2*w'''+p)]
    w = jnp.arange(12)
    wp2 = 2 * jnp.arange(4)[None, :] + jnp.arange(2)[:, None]       # [2, 4]
    d = w[:, None, None] - wp2[None]                                # [12, 2, 4]
    valid2 = (d >= 0) & (d < 5)
    w2g = w2[:, :, :, jnp.clip(d, 0, 4)] * valid2[None, None, None].astype(f32)
    # [co, ci, i, w, p, w'''] -> [i, ci, w, p, co, w''']
    W2rows = w2g.transpose(2, 1, 3, 4, 0, 5).reshape(5, 120, 2, 80)
    W2rows = jnp.pad(W2rows, ((0, 0), (0, 8), (0, 0), (0, 48)))     # K->128, N blk->128
    W2rows = W2rows.reshape(5, 128, 256)
    b2row = jnp.pad(jnp.repeat(b2, 4), (0, 48))[None, :]            # [1, 128] pooled bias

    # fc weight permuted to the (h, cout*4 + w) activation layout (torch
    # view(B,-1) order: feature = co*16 + h*4 + w), zero-padded to 128x128:
    Wfc = wfc.reshape(10, 20, 4, 4).transpose(2, 1, 3, 0).reshape(4, 80, 10)
    Wfc = jnp.pad(Wfc, ((0, 0), (0, 48), (0, 118)))                 # [4, 128, 128]
    # pad lanes get a huge-negative bias so exp()==0 in log_softmax
    bfcrow = jnp.concatenate([bfc, jnp.full((118,), -1e30, f32)])[None, :]

    return (W1cat, b1row, W2rows, b2row, Wfc, bfcrow)


def _round_up(n, m):
    return ((n + m - 1) // m) * m


def _cdiv(a, b):
    return -(-a // b)


# --------------------------------------------------------------- forward pass
def net_forward(x, params):
    """x: [B, 1, 28, 28] float32 (NCHW).  Returns log-probabilities [B, 10]."""
    B = x.shape[0]
    assert x.shape[1:] == (1, 28, 28)
    W1cat, b1row, W2rows, b2row, Wfc, bfcrow = _prep_params(params)

    # Batch tiling: up to 256 rows / tile (fits v7x's 64 MiB VMEM comfortably,
    # amortizes per-step overhead), chosen to divide B_pad tightly, and split
    # into >=2 tiles when possible so both v7x TensorCores get work.
    n_tiles = max(1, _cdiv(B, 256))
    TB = _round_up(_cdiv(B, n_tiles), 8)
    if n_tiles == 1 and TB > 8:
        n_tiles, TB = 2, _round_up(_cdiv(B, 2), 8)
    B_pad = n_tiles * TB

    # Pre-im2col the 5 H-taps in the wrapper: xc[b, h', i*28 + l] = x[b, h'+i, l]
    xr = x.reshape(B, 28, 28).astype(jnp.float32)
    xc = jnp.concatenate([xr[:, i:i + 24, :] for i in range(5)], axis=-1)  # [B,24,140]
    if B_pad != B:
        xc = jnp.pad(xc, ((0, B_pad - B), (0, 0), (0, 0)))
    xc = xc.transpose(1, 0, 2)               # [24, B_pad, 140]  (h', b, taps*W)

    # weights use constant index_maps -> fetched once, VMEM-resident across grid
    const = lambda shape: pl.BlockSpec(shape, lambda b: (0,) * len(shape))
    out = pl.pallas_call(
        _net_fused_kernel,
        out_shape=jax.ShapeDtypeStruct((B_pad, 128), jnp.float32),
        grid=(n_tiles,),
        in_specs=[
            pl.BlockSpec((24, TB, 140), lambda b: (0, b, 0)),   # input batch tile
            const((140, 256)),     # W1cat  (fused-tap conv1 weights)
            const((1, 128)),       # pooled conv1 bias
            const((5, 128, 256)),  # W2rows (banded conv2 weights)
            const((1, 128)),       # pooled conv2 bias
            const((4, 128, 128)),  # fc weight (permuted, padded)
            const((1, 128)),       # fc bias (pad lanes = -1e30)
        ],
        out_specs=pl.BlockSpec((TB, 128), lambda b: (b, 0)),    # lane-dense store
        compiler_params=pltpu.CompilerParams(
            dimension_semantics=("parallel",),
            vmem_limit_bytes=48 * 1024 * 1024),
    )(xc, W1cat, b1row, W2rows, b2row, Wfc, bfcrow)
    return out[:B, :10]


# ------------------------------------------------------------ pure-JAX reference
def _reference_forward(x, params):
    hp = jax.lax.Precision.HIGHEST
    y = jax.lax.conv_general_dilated(
        x, params["w1"], (1, 1), "VALID",
        dimension_numbers=("NCHW", "OIHW", "NCHW"), precision=hp)
    y = y + params["b1"][None, :, None, None]
    y = jax.lax.reduce_window(y, -jnp.inf, jax.lax.max, (1, 1, 2, 2), (1, 1, 2, 2), "VALID")
    y = jnp.maximum(y, 0.0)
    y = jax.lax.conv_general_dilated(
        y, params["w2"], (1, 1), "VALID",
        dimension_numbers=("NCHW", "OIHW", "NCHW"), precision=hp)
    y = y + params["b2"][None, :, None, None]
    y = jax.lax.reduce_window(y, -jnp.inf, jax.lax.max, (1, 1, 2, 2), (1, 1, 2, 2), "VALID")
    y = jnp.maximum(y, 0.0)
    y = y.reshape(x.shape[0], -1)
    z = jnp.dot(y, params["wfc"].T, precision=hp) + params["bfc"]
    return jax.nn.log_softmax(z, axis=-1)


def init_params(key):
    """Deterministic PyTorch-default-style init (uniform(-1/sqrt(fan_in), +))."""
    ks = jax.random.split(key, 6)

    def u(k, shape, fan_in):
        bound = 1.0 / (fan_in ** 0.5)
        return jax.random.uniform(k, shape, jnp.float32, -bound, bound)

    return {
        "w1": u(ks[0], (10, 1, 5, 5), 1 * 5 * 5),
        "b1": u(ks[1], (10,), 1 * 5 * 5),
        "w2": u(ks[2], (20, 10, 5, 5), 10 * 5 * 5),
        "b2": u(ks[3], (20,), 10 * 5 * 5),
        "wfc": u(ks[4], (10, 320), 320),
        "bfc": u(ks[5], (10,), 320),
    }


if __name__ == "__main__":
    key = jax.random.PRNGKey(0)
    kx, kp = jax.random.split(key)
    # fc expects 320 = 20 * 4 * 4 features, which forces 28x28 spatial input.
    x = jax.random.normal(kx, (2, 1, 28, 28), dtype=jnp.float32)
    params = init_params(kp)

    out = jax.block_until_ready(jax.jit(net_forward)(x, params))
    ref = jax.block_until_ready(_reference_forward(x, params))

    assert out.shape == (2, 10) and out.dtype == jnp.float32
    # log_softmax rows must exponentiate-sum to ~1
    assert bool(jnp.allclose(jnp.sum(jnp.exp(out), axis=-1), 1.0, atol=1e-5))
    err = float(jnp.max(jnp.abs(out - ref)))
    assert err < 1e-3, f"mismatch vs reference: max abs err = {err}"
    print("KERNEL_OK")
</pallas_src>

<mosaic_0001>
module attributes {stable_mosaic.version = 11 : i64} {
  func.func @_net_fused_kernel(%arg0: i32, %arg1: memref<24x8x140xf32, #tpu.memory_space<vmem>>, %arg2: memref<140x256xf32, #tpu.memory_space<vmem>>, %arg3: memref<1x128xf32, #tpu.memory_space<vmem>>, %arg4: memref<5x128x256xf32, #tpu.memory_space<vmem>>, %arg5: memref<1x128xf32, #tpu.memory_space<vmem>>, %arg6: memref<4x128x128xf32, #tpu.memory_space<vmem>>, %arg7: memref<1x128xf32, #tpu.memory_space<vmem>>, %arg8: memref<8x128xf32, #tpu.memory_space<vmem>>) attributes {dimension_semantics = [#tpu.dimension_semantics<parallel>], iteration_bounds = array<i64: 1>, scalar_prefetch = 0 : i64, scratch_operands = 0 : i64, tpu.core_type = #tpu.core_type<tc>, window_params = [{transform_indices = @transform_0, window_bounds = array<i64: 24, 8, 140>}, {pipeline_mode = #tpu.pipeline_mode<synchronous>, transform_indices = @transform_1, window_bounds = array<i64: 140, 256>}, {pipeline_mode = #tpu.pipeline_mode<synchronous>, transform_indices = @transform_2, window_bounds = array<i64: 1, 128>}, {pipeline_mode = #tpu.pipeline_mode<synchronous>, transform_indices = @transform_3, window_bounds = array<i64: 5, 128, 256>}, {pipeline_mode = #tpu.pipeline_mode<synchronous>, transform_indices = @transform_4, window_bounds = array<i64: 1, 128>}, {pipeline_mode = #tpu.pipeline_mode<synchronous>, transform_indices = @transform_5, window_bounds = array<i64: 4, 128, 128>}, {pipeline_mode = #tpu.pipeline_mode<synchronous>, transform_indices = @transform_6, window_bounds = array<i64: 1, 128>}, {transform_indices = @transform_7, window_bounds = array<i64: 8, 128>}]} {
    %c0 = arith.constant 0 : index
    %c0_0 = arith.constant 0 : index
    %c0_1 = arith.constant 0 : index
    %0 = vector.load %arg1[%c0, %c0_0, %c0_1] : memref<24x8x140xf32, #tpu.memory_space<vmem>>, vector<24x8x140xf32>
    %c0_2 = arith.constant 0 : index
    %c0_3 = arith.constant 0 : index
    %1 = vector.load %arg2[%c0_2, %c0_3] : memref<140x256xf32, #tpu.memory_space<vmem>>, vector<140x256xf32>
    %c0_4 = arith.constant 0 : index
    %c0_5 = arith.constant 0 : index
    %c0_6 = arith.constant 0 : index
    %2 = vector.load %arg4[%c0_4, %c0_5, %c0_6] : memref<5x128x256xf32, #tpu.memory_space<vmem>>, vector<5x128x256xf32>
    %c0_7 = arith.constant 0 : index
    %c0_8 = arith.constant 0 : index
    %c0_9 = arith.constant 0 : index
    %3 = vector.load %arg6[%c0_7, %c0_8, %c0_9] : memref<4x128x128xf32, #tpu.memory_space<vmem>>, vector<4x128x128xf32>
    %4 = vector.shape_cast %0 : vector<24x8x140xf32> to vector<192x140xf32>
    %cst = arith.constant dense<0.000000e+00> : vector<192x256xf32>
    %5 = tpu.matmul %4, %1, %cst {dimension_numbers = #tpu.dot_dimension_numbers<[1], [0], [0], [1], [0, 0, 1, 1], [], []>} : vector<192x140xf32>, vector<140x256xf32>, vector<192x256xf32> -> vector<192x256xf32>
    %6 = vector.shape_cast %5 : vector<192x256xf32> to vector<12x2x8x256xf32>
    %7 = vector.extract_strided_slice %6 {offsets = [0, 0, 0, 0], sizes = [12, 1, 8, 256], strides = [1, 1, 1, 1]} : vector<12x2x8x256xf32> to vector<12x1x8x256xf32>
    %8 = vector.shape_cast %7 : vector<12x1x8x256xf32> to vector<12x8x256xf32>
    %9 = vector.extract_strided_slice %6 {offsets = [0, 1, 0, 0], sizes = [12, 1, 8, 256], strides = [1, 1, 1, 1]} : vector<12x2x8x256xf32> to vector<12x1x8x256xf32>
    %10 = vector.shape_cast %9 : vector<12x1x8x256xf32> to vector<12x8x256xf32>
    %11 = arith.maximumf %8, %10 : vector<12x8x256xf32>
    %12 = vector.shape_cast %11 : vector<12x8x256xf32> to vector<96x256xf32>
    %13 = vector.extract_strided_slice %12 {offsets = [0, 0], sizes = [96, 128], strides = [1, 1]} : vector<96x256xf32> to vector<96x128xf32>
    %14 = vector.extract_strided_slice %12 {offsets = [0, 128], sizes = [96, 128], strides = [1, 1]} : vector<96x256xf32> to vector<96x128xf32>
    %15 = arith.maximumf %13, %14 : vector<96x128xf32>
    %c0_10 = arith.constant 0 : index
    %c0_11 = arith.constant 0 : index
    %16 = vector.load %arg3[%c0_10, %c0_11] : memref<1x128xf32, #tpu.memory_space<vmem>>, vector<1x128xf32>
    %17 = vector.broadcast %16 : vector<1x128xf32> to vector<96x128xf32>
    %18 = arith.addf %15, %17 : vector<96x128xf32>
    %cst_12 = arith.constant 0.000000e+00 : f32
    %19 = vector.broadcast %cst_12 : f32 to vector<96x128xf32>
    %20 = arith.maximumf %18, %19 : vector<96x128xf32>
    %21 = vector.shape_cast %20 : vector<96x128xf32> to vector<12x8x128xf32>
    %22 = vector.extract_strided_slice %21 {offsets = [0, 0, 0], sizes = [8, 8, 128], strides = [1, 1, 1]} : vector<12x8x128xf32> to vector<8x8x128xf32>
    %23 = vector.shape_cast %22 : vector<8x8x128xf32> to vector<64x128xf32>
    %24 = vector.extract_strided_slice %2 {offsets = [0, 0, 0], sizes = [1, 128, 256], strides = [1, 1, 1]} : vector<5x128x256xf32> to vector<1x128x256xf32>
    %25 = vector.shape_cast %24 : vector<1x128x256xf32> to vector<128x256xf32>
    %cst_13 = arith.constant dense<0.000000e+00> : vector<64x256xf32>
    %26 = tpu.matmul %23, %25, %cst_13 {dimension_numbers = #tpu.dot_dimension_numbers<[1], [0], [0], [1], [0, 0, 1, 1], [], []>} : vector<64x128xf32>, vector<128x256xf32>, vector<64x256xf32> -> vector<64x256xf32>
    %27 = vector.extract_strided_slice %21 {offsets = [1, 0, 0], sizes = [8, 8, 128], strides = [1, 1, 1]} : vector<12x8x128xf32> to vector<8x8x128xf32>
    %28 = vector.shape_cast %27 : vector<8x8x128xf32> to vector<64x128xf32>
    %29 = vector.extract_strided_slice %2 {offsets = [1, 0, 0], sizes = [1, 128, 256], strides = [1, 1, 1]} : vector<5x128x256xf32> to vector<1x128x256xf32>
    %30 = vector.shape_cast %29 : vector<1x128x256xf32> to vector<128x256xf32>
    %cst_14 = arith.constant dense<0.000000e+00> : vector<64x256xf32>
    %31 = tpu.matmul %28, %30, %cst_14 {dimension_numbers = #tpu.dot_dimension_numbers<[1], [0], [0], [1], [0, 0, 1, 1], [], []>} : vector<64x128xf32>, vector<128x256xf32>, vector<64x256xf32> -> vector<64x256xf32>
    %32 = arith.addf %26, %31 : vector<64x256xf32>
    %33 = vector.extract_strided_slice %21 {offsets = [2, 0, 0], sizes = [8, 8, 128], strides = [1, 1, 1]} : vector<12x8x128xf32> to vector<8x8x128xf32>
    %34 = vector.shape_cast %33 : vector<8x8x128xf32> to vector<64x128xf32>
    %35 = vector.extract_strided_slice %2 {offsets = [2, 0, 0], sizes = [1, 128, 256], strides = [1, 1, 1]} : vector<5x128x256xf32> to vector<1x128x256xf32>
    %36 = vector.shape_cast %35 : vector<1x128x256xf32> to vector<128x256xf32>
    %cst_15 = arith.constant dense<0.000000e+00> : vector<64x256xf32>
    %37 = tpu.matmul %34, %36, %cst_15 {dimension_numbers = #tpu.dot_dimension_numbers<[1], [0], [0], [1], [0, 0, 1, 1], [], []>} : vector<64x128xf32>, vector<128x256xf32>, vector<64x256xf32> -> vector<64x256xf32>
    %38 = arith.addf %32, %37 : vector<64x256xf32>
    %39 = vector.extract_strided_slice %21 {offsets = [3, 0, 0], sizes = [8, 8, 128], strides = [1, 1, 1]} : vector<12x8x128xf32> to vector<8x8x128xf32>
    %40 = vector.shape_cast %39 : vector<8x8x128xf32> to vector<64x128xf32>
    %41 = vector.extract_strided_slice %2 {offsets = [3, 0, 0], sizes = [1, 128, 256], strides = [1, 1, 1]} : vector<5x128x256xf32> to vector<1x128x256xf32>
    %42 = vector.shape_cast %41 : vector<1x128x256xf32> to vector<128x256xf32>
    %cst_16 = arith.constant dense<0.000000e+00> : vector<64x256xf32>
    %43 = tpu.matmul %40, %42, %cst_16 {dimension_numbers = #tpu.dot_dimension_numbers<[1], [0], [0], [1], [0, 0, 1, 1], [], []>} : vector<64x128xf32>, vector<128x256xf32>, vector<64x256xf32> -> vector<64x256xf32>
    %44 = arith.addf %38, %43 : vector<64x256xf32>
    %45 = vector.extract_strided_slice %21 {offsets = [4, 0, 0], sizes = [8, 8, 128], strides = [1, 1, 1]} : vector<12x8x128xf32> to vector<8x8x128xf32>
    %46 = vector.shape_cast %45 : vector<8x8x128xf32> to vector<64x128xf32>
    %47 = vector.extract_strided_slice %2 {offsets = [4, 0, 0], sizes = [1, 128, 256], strides = [1, 1, 1]} : vector<5x128x256xf32> to vector<1x128x256xf32>
    %48 = vector.shape_cast %47 : vector<1x128x256xf32> to vector<128x256xf32>
    %cst_17 = arith.constant dense<0.000000e+00> : vector<64x256xf32>
    %49 = tpu.matmul %46, %48, %cst_17 {dimension_numbers = #tpu.dot_dimension_numbers<[1], [0], [0], [1], [0, 0, 1, 1], [], []>} : vector<64x128xf32>, vector<128x256xf32>, vector<64x256xf32> -> vector<64x256xf32>
    %50 = arith.addf %44, %49 : vector<64x256xf32>
    %51 = vector.shape_cast %50 : vector<64x256xf32> to vector<4x2x8x256xf32>
    %52 = vector.extract_strided_slice %51 {offsets = [0, 0, 0, 0], sizes = [4, 1, 8, 256], strides = [1, 1, 1, 1]} : vector<4x2x8x256xf32> to vector<4x1x8x256xf32>
    %53 = vector.shape_cast %52 : vector<4x1x8x256xf32> to vector<4x8x256xf32>
    %54 = vector.extract_strided_slice %51 {offsets = [0, 1, 0, 0], sizes = [4, 1, 8, 256], strides = [1, 1, 1, 1]} : vector<4x2x8x256xf32> to vector<4x1x8x256xf32>
    %55 = vector.shape_cast %54 : vector<4x1x8x256xf32> to vector<4x8x256xf32>
    %56 = arith.maximumf %53, %55 : vector<4x8x256xf32>
    %57 = vector.shape_cast %56 : vector<4x8x256xf32> to vector<32x256xf32>
    %58 = vector.extract_strided_slice %57 {offsets = [0, 0], sizes = [32, 128], strides = [1, 1]} : vector<32x256xf32> to vector<32x128xf32>
    %59 = vector.extract_strided_slice %57 {offsets = [0, 128], sizes = [32, 128], strides = [1, 1]} : vector<32x256xf32> to vector<32x128xf32>
    %60 = arith.maximumf %58, %59 : vector<32x128xf32>
    %c0_18 = arith.constant 0 : index
    %c0_19 = arith.constant 0 : index
    %61 = vector.load %arg5[%c0_18, %c0_19] : memref<1x128xf32, #tpu.memory_space<vmem>>, vector<1x128xf32>
    %62 = vector.broadcast %61 : vector<1x128xf32> to vector<32x128xf32>
    %63 = arith.addf %60, %62 : vector<32x128xf32>
    %cst_20 = arith.constant 0.000000e+00 : f32
    %64 = vector.broadcast %cst_20 : f32 to vector<32x128xf32>
    %65 = arith.maximumf %63, %64 : vector<32x128xf32>
    %66 = vector.shape_cast %65 : vector<32x128xf32> to vector<4x8x128xf32>
    %67 = vector.extract_strided_slice %66 {offsets = [0, 0, 0], sizes = [1, 8, 128], strides = [1, 1, 1]} : vector<4x8x128xf32> to vector<1x8x128xf32>
    %68 = vector.shape_cast %67 : vector<1x8x128xf32> to vector<8x128xf32>
    %69 = vector.extract_strided_slice %3 {offsets = [0, 0, 0], sizes = [1, 128, 128], strides = [1, 1, 1]} : vector<4x128x128xf32> to vector<1x128x128xf32>
    %70 = vector.shape_cast %69 : vector<1x128x128xf32> to vector<128x128xf32>
    %cst_21 = arith.constant dense<0.000000e+00> : vector<8x128xf32>
    %71 = tpu.matmul %68, %70, %cst_21 {dimension_numbers = #tpu.dot_dimension_numbers<[1], [0], [0], [1], [0, 0, 1, 1], [], []>} : vector<8x128xf32>, vector<128x128xf32>, vector<8x128xf32> -> vector<8x128xf32>
    %72 = vector.extract_strided_slice %66 {offsets = [1, 0, 0], sizes = [1, 8, 128], strides = [1, 1, 1]} : vector<4x8x128xf32> to vector<1x8x128xf32>
    %73 = vector.shape_cast %72 : vector<1x8x128xf32> to vector<8x128xf32>
    %74 = vector.extract_strided_slice %3 {offsets = [1, 0, 0], sizes = [1, 128, 128], strides = [1, 1, 1]} : vector<4x128x128xf32> to vector<1x128x128xf32>
    %75 = vector.shape_cast %74 : vector<1x128x128xf32> to vector<128x128xf32>
    %cst_22 = arith.constant dense<0.000000e+00> : vector<8x128xf32>
    %76 = tpu.matmul %73, %75, %cst_22 {dimension_numbers = #tpu.dot_dimension_numbers<[1], [0], [0], [1], [0, 0, 1, 1], [], []>} : vector<8x128xf32>, vector<128x128xf32>, vector<8x128xf32> -> vector<8x128xf32>
    %77 = arith.addf %71, %76 : vector<8x128xf32>
    %78 = vector.extract_strided_slice %66 {offsets = [2, 0, 0], sizes = [1, 8, 128], strides = [1, 1, 1]} : vector<4x8x128xf32> to vector<1x8x128xf32>
    %79 = vector.shape_cast %78 : vector<1x8x128xf32> to vector<8x128xf32>
    %80 = vector.extract_strided_slice %3 {offsets = [2, 0, 0], sizes = [1, 128, 128], strides = [1, 1, 1]} : vector<4x128x128xf32> to vector<1x128x128xf32>
    %81 = vector.shape_cast %80 : vector<1x128x128xf32> to vector<128x128xf32>
    %cst_23 = arith.constant dense<0.000000e+00> : vector<8x128xf32>
    %82 = tpu.matmul %79, %81, %cst_23 {dimension_numbers = #tpu.dot_dimension_numbers<[1], [0], [0], [1], [0, 0, 1, 1], [], []>} : vector<8x128xf32>, vector<128x128xf32>, vector<8x128xf32> -> vector<8x128xf32>
    %83 = arith.addf %77, %82 : vector<8x128xf32>
    %84 = vector.extract_strided_slice %66 {offsets = [3, 0, 0], sizes = [1, 8, 128], strides = [1, 1, 1]} : vector<4x8x128xf32> to vector<1x8x128xf32>
    %85 = vector.shape_cast %84 : vector<1x8x128xf32> to vector<8x128xf32>
    %86 = vector.extract_strided_slice %3 {offsets = [3, 0, 0], sizes = [1, 128, 128], strides = [1, 1, 1]} : vector<4x128x128xf32> to vector<1x128x128xf32>
    %87 = vector.shape_cast %86 : vector<1x128x128xf32> to vector<128x128xf32>
    %cst_24 = arith.constant dense<0.000000e+00> : vector<8x128xf32>
    %88 = tpu.matmul %85, %87, %cst_24 {dimension_numbers = #tpu.dot_dimension_numbers<[1], [0], [0], [1], [0, 0, 1, 1], [], []>} : vector<8x128xf32>, vector<128x128xf32>, vector<8x128xf32> -> vector<8x128xf32>
    %89 = arith.addf %83, %88 : vector<8x128xf32>
    %c0_25 = arith.constant 0 : index
    %c0_26 = arith.constant 0 : index
    %90 = vector.load %arg7[%c0_25, %c0_26] : memref<1x128xf32, #tpu.memory_space<vmem>>, vector<1x128xf32>
    %91 = vector.broadcast %90 : vector<1x128xf32> to vector<8x128xf32>
    %92 = arith.addf %89, %91 : vector<8x128xf32>
    %cst_27 = arith.constant dense<0xFF800000> : vector<8xf32>
    %93 = vector.multi_reduction <maximumf>, %92, %cst_27 [1] : vector<8x128xf32> to vector<8xf32>
    %94 = vector.shape_cast %93 : vector<8xf32> to vector<8x1xf32>
    %95 = vector.broadcast %94 : vector<8x1xf32> to vector<8x128xf32>
    %96 = arith.subf %92, %95 : vector<8x128xf32>
    %97 = math.exp %96 : vector<8x128xf32>
    %cst_28 = arith.constant dense<0.000000e+00> : vector<8xf32>
    %98 = vector.multi_reduction <add>, %97, %cst_28 [1] : vector<8x128xf32> to vector<8xf32>
    %99 = vector.shape_cast %98 : vector<8xf32> to vector<8x1xf32>
    %100 = math.log %99 : vector<8x1xf32>
    %101 = vector.broadcast %100 : vector<8x1xf32> to vector<8x128xf32>
    %102 = arith.subf %96, %101 : vector<8x128xf32>
    %c0_29 = arith.constant 0 : index
    %c0_30 = arith.constant 0 : index
    %103 = vector.load %arg8[%c0_29, %c0_30] : memref<8x128xf32, #tpu.memory_space<vmem>>, vector<8x128xf32>
    tpu.vector_store %arg8[%c0_29, %c0_30], %102 {strides = array<i32>} : memref<8x128xf32, #tpu.memory_space<vmem>>, vector<8x128xf32>,
    return
  }
  func.func @transform_0(%arg0: i32) -> (i32, i32, i32) {
    %c0_i32 = arith.constant 0 : i32
    %c0_i32_0 = arith.constant 0 : i32
    %c0_i32_1 = arith.constant 0 : i32
    return %c0_i32, %arg0, %c0_i32_0 : i32, i32, i32
  }
  func.func @transform_1(%arg0: i32) -> (i32, i32) {
    %c0_i32 = arith.constant 0 : i32
    %c0_i32_0 = arith.constant 0 : i32
    %c0_i32_1 = arith.constant 0 : i32
    return %c0_i32, %c0_i32_0 : i32, i32
  }
  func.func @transform_2(%arg0: i32) -> (i32, i32) {
    %c0_i32 = arith.constant 0 : i32
    %c0_i32_0 = arith.constant 0 : i32
    %c0_i32_1 = arith.constant 0 : i32
    return %c0_i32, %c0_i32_0 : i32, i32
  }
  func.func @transform_3(%arg0: i32) -> (i32, i32, i32) {
    %c0_i32 = arith.constant 0 : i32
    %c0_i32_0 = arith.constant 0 : i32
    %c0_i32_1 = arith.constant 0 : i32
    %c0_i32_2 = arith.constant 0 : i32
    return %c0_i32, %c0_i32_0, %c0_i32_1 : i32, i32, i32
  }
  func.func @transform_4(%arg0: i32) -> (i32, i32) {
    %c0_i32 = arith.constant 0 : i32
    %c0_i32_0 = arith.constant 0 : i32
    %c0_i32_1 = arith.constant 0 : i32
    return %c0_i32, %c0_i32_0 : i32, i32
  }
  func.func @transform_5(%arg0: i32) -> (i32, i32, i32) {
    %c0_i32 = arith.constant 0 : i32
    %c0_i32_0 = arith.constant 0 : i32
    %c0_i32_1 = arith.constant 0 : i32
    %c0_i32_2 = arith.constant 0 : i32
    return %c0_i32, %c0_i32_0, %c0_i32_1 : i32, i32, i32
  }
  func.func @transform_6(%arg0: i32) -> (i32, i32) {
    %c0_i32 = arith.constant 0 : i32
    %c0_i32_0 = arith.constant 0 : i32
    %c0_i32_1 = arith.constant 0 : i32
    return %c0_i32, %c0_i32_0 : i32, i32
  }
  func.func @transform_7(%arg0: i32) -> (i32, i32) {
    %c0_i32 = arith.constant 0 : i32
    %c0_i32_0 = arith.constant 0 : i32
    return %arg0, %c0_i32 : i32, i32
  }
}

</mosaic_0001>

<llo_original>
// kernel: net_forward.1
$region0: #{net_forward.1}
  #allocation0 [shape = 'u32[]', space=smem, size = 0x4, offset = 0x4, fixed_abs, tag = 'smem constant byte address 0x4 - core index']
  #allocation1 [shape = 'u32[144,128]{1,0:T(1,128)}', space=vmem, size = 0x12000, scoped, tag = 'internal scratch']
  %s0 = inlined_call_operand.vmem [shape: f32[24,8,140], index: 0, kind: input, shape index: {}]
  %s1 = inlined_call_operand.vmem [shape: f32[140,256], index: 1, kind: input, shape index: {}]
  %s2 = inlined_call_operand.vmem [shape: f32[1,128], index: 2, kind: input, shape index: {}]
  %s3 = inlined_call_operand.vmem [shape: f32[5,128,256], index: 3, kind: input, shape index: {}]
  %s4 = inlined_call_operand.vmem [shape: f32[1,128], index: 4, kind: input, shape index: {}]
  %s5 = inlined_call_operand.vmem [shape: f32[4,128,128], index: 5, kind: input, shape index: {}]
  %s6 = inlined_call_operand.vmem [shape: f32[1,128], index: 6, kind: input, shape index: {}]
  %s7 = inlined_call_operand.vmem [shape: f32[8,128], index: 7, kind: output, shape index: {}]
  %s8 = sld [smem:[#allocation0]]
  $region38: #{net_forward.1} parent=0
    _
  %s10 = ssub.s32 1, %s8
  %s11 = scalar_select 0, %s10, %s8
  // Predicated region
  $region2: #{net_forward.1} parent=0 // pred_check
    _
  $region3: #{net_forward.1} parent=0 // pred_check_branch
    %13 = sbr.rel (0) target = $region5
  $region4: #{net_forward.1} parent=0 // pred_region
    _
  $region5: #{net_forward.1} parent=0 // pred_fallthru
    _
  // Predicated region
  $region6: #{net_forward.1} parent=0 // pred_check
    _
  $region7: #{net_forward.1} parent=0 // pred_check_branch
    %15 = sbr.rel (0) target = $region9
  $region8: #{net_forward.1} parent=0 // pred_region
    _
  $region9: #{net_forward.1} parent=0 // pred_fallthru
    _
  // Predicated region
  $region10: #{net_forward.1} parent=0 // pred_check
    _
  $region11: #{net_forward.1} parent=0 // pred_check_branch
    %17 = sbr.rel (0) target = $region13
  $region12: #{net_forward.1} parent=0 // pred_region
    _
  $region13: #{net_forward.1} parent=0 // pred_fallthru
    _
  // Predicated region
  $region14: #{net_forward.1} parent=0 // pred_check
    _
  $region15: #{net_forward.1} parent=0 // pred_check_branch
    %19 = sbr.rel (0) target = $region17
  $region16: #{net_forward.1} parent=0 // pred_region
    _
  $region17: #{net_forward.1} parent=0 // pred_fallthru
    _
  // Predicated region
  $region18: #{net_forward.1} parent=0 // pred_check
    _
  $region19: #{net_forward.1} parent=0 // pred_check_branch
    %21 = sbr.rel (0) target = $region21
  $region20: #{net_forward.1} parent=0 // pred_region
    _
  $region21: #{net_forward.1} parent=0 // pred_fallthru
    _
  // Predicated region
  $region22: #{net_forward.1} parent=0 // pred_check
    _
  $region23: #{net_forward.1} parent=0 // pred_check_branch
    %23 = sbr.rel (0) target = $region25
  $region24: #{net_forward.1} parent=0 // pred_region
    _
  $region25: #{net_forward.1} parent=0 // pred_fallthru
    _
  // Predicated region
  $region26: #{net_forward.1} parent=0 // pred_check
    _
  $region27: #{net_forward.1} parent=0 // pred_check_branch
    %25 = sbr.rel (0) target = $region29
  $region28: #{net_forward.1} parent=0 // pred_region
    _
  $region29: #{net_forward.1} parent=0 // pred_fallthru
    _
  %v26 = vld [vmem:[%s0] sm:$0xff]
  %v27 = vld [vmem:[%s0 + $0x8] sm:$0xff]
  %v28 = vld [vmem:[%s0 + $0x10] sm:$0xff]
  %v29 = vld [vmem:[%s0 + $0x18] sm:$0xff]
  %v30 = vld [vmem:[%s0 + $0x20] sm:$0xff]
  %v31 = vld [vmem:[%s0 + $0x28] sm:$0xff]
  %v32 = vld [vmem:[%s0 + $0x30] sm:$0xff]
  %v33 = vld [vmem:[%s0 + $0x38] sm:$0xff]
  %v34 = vld [vmem:[%s0 + $0x40] sm:$0xff]
  %v35 = vld [vmem:[%s0 + $0x48] sm:$0xff]
  %v36 = vld [vmem:[%s0 + $0x50] sm:$0xff]
  %v37 = vld [vmem:[%s0 + $0x58] sm:$0xff]
  %v38 = vld [vmem:[%s0 + $0x60] sm:$0xff]
  %v39 = vld [vmem:[%s0 + $0x68] sm:$0xff]
  %v40 = vld [vmem:[%s0 + $0x70] sm:$0xff]
  %v41 = vld [vmem:[%s0 + $0x78] sm:$0xff]
  %v42 = vld [vmem:[%s0 + $0x80] sm:$0xff]
  %v43 = vld [vmem:[%s0 + $0x88] sm:$0xff]
  %v44 = vld [vmem:[%s0 + $0x90] sm:$0xff]
  %v45 = vld [vmem:[%s0 + $0x98] sm:$0xff]
  %v46 = vld [vmem:[%s0 + $0xa0] sm:$0xff]
  %v47 = vld [vmem:[%s0 + $0xa8] sm:$0xff]
  %v48 = vld [vmem:[%s0 + $0xb0] sm:$0xff]
  %v49 = vld [vmem:[%s0 + $0xb8] sm:$0xff]
  %v50 = vld [vmem:[%s0 + $0xc0] sm:$0xff]
  %v51 = vld [vmem:[%s0 + $0xc8] sm:$0xff]
  %v52 = vld [vmem:[%s0 + $0xd0] sm:$0xff]
  %v53 = vld [vmem:[%s0 + $0xd8] sm:$0xff]
  %v54 = vld [vmem:[%s0 + $0xe0] sm:$0xff]
  %v55 = vld [vmem:[%s0 + $0xe8] sm:$0xff]
  %v56 = vld [vmem:[%s0 + $0xf0] sm:$0xff]
  %v57 = vld [vmem:[%s0 + $0xf8] sm:$0xff]
  %v58 = vld [vmem:[%s0 + $0x100] sm:$0xff]
  %v59 = vld [vmem:[%s0 + $0x108] sm:$0xff]
  %v60 = vld [vmem:[%s0 + $0x110] sm:$0xff]
  %v61 = vld [vmem:[%s0 + $0x118] sm:$0xff]
  %v62 = vld [vmem:[%s0 + $0x120] sm:$0xff]
  %v63 = vld [vmem:[%s0 + $0x128] sm:$0xff]
  %v64 = vld [vmem:[%s0 + $0x130] sm:$0xff]
  %v65 = vld [vmem:[%s0 + $0x138] sm:$0xff]
  %v66 = vld [vmem:[%s0 + $0x140] sm:$0xff]
  %v67 = vld [vmem:[%s0 + $0x148] sm:$0xff]
  %v68 = vld [vmem:[%s0 + $0x150] sm:$0xff]
  %v69 = vld [vmem:[%s0 + $0x158] sm:$0xff]
  %v70 = vld [vmem:[%s0 + $0x160] sm:$0xff]
  %v71 = vld [vmem:[%s0 + $0x168] sm:$0xff]
  %v72 = vld [vmem:[%s0 + $0x170] sm:$0xff]
  %v73 = vld [vmem:[%s0 + $0x178] sm:$0xff]
  %v74 = vld [vmem:[%s1] sm:$0xff]
  %v75 = vld [vmem:[%s1 + $0x8] sm:$0xff]
  %v76 = vld [vmem:[%s1 + $0x10] sm:$0xff]
  %v77 = vld [vmem:[%s1 + $0x18] sm:$0xff]
  %v78 = vld [vmem:[%s1 + $0x20] sm:$0xff]
  %v79 = vld [vmem:[%s1 + $0x28] sm:$0xff]
  %v80 = vld [vmem:[%s1 + $0x30] sm:$0xff]
  %v81 = vld [vmem:[%s1 + $0x38] sm:$0xff]
  %v82 = vld [vmem:[%s1 + $0x40] sm:$0xff]
  %v83 = vld [vmem:[%s1 + $0x48] sm:$0xff]
  %v84 = vld [vmem:[%s1 + $0x50] sm:$0xff]
  %v85 = vld [vmem:[%s1 + $0x58] sm:$0xff]
  %v86 = vld [vmem:[%s1 + $0x60] sm:$0xff]
  %v87 = vld [vmem:[%s1 + $0x68] sm:$0xff]
  %v88 = vld [vmem:[%s1 + $0x70] sm:$0xff]
  %v89 = vld [vmem:[%s1 + $0x78] sm:$0xff]
  %v90 = vld [vmem:[%s1 + $0x80] sm:$0xff]
  %v91 = vld [vmem:[%s1 + $0x88] sm:$0xff]
  %v92 = vld [vmem:[%s1 + $0x90] sm:$0xff]
  %v93 = vld [vmem:[%s1 + $0x98] sm:$0xff]
  %v94 = vld [vmem:[%s1 + $0xa0] sm:$0xff]
  %v95 = vld [vmem:[%s1 + $0xa8] sm:$0xff]
  %v96 = vld [vmem:[%s1 + $0xb0] sm:$0xff]
  %v97 = vld [vmem:[%s1 + $0xb8] sm:$0xff]
  %v98 = vld [vmem:[%s1 + $0xc0] sm:$0xff]
  %v99 = vld [vmem:[%s1 + $0xc8] sm:$0xff]
  %v100 = vld [vmem:[%s1 + $0xd0] sm:$0xff]
  %v101 = vld [vmem:[%s1 + $0xd8] sm:$0xff]
  %v102 = vld [vmem:[%s1 + $0xe0] sm:$0xff]
  %v103 = vld [vmem:[%s1 + $0xe8] sm:$0xff]
  %v104 = vld [vmem:[%s1 + $0xf0] sm:$0xff]
  %v105 = vld [vmem:[%s1 + $0xf8] sm:$0xff]
  %v106 = vld [vmem:[%s1 + $0x100] sm:$0xff]
  %v107 = vld [vmem:[%s1 + $0x108] sm:$0xff]
  %v108 = vld [vmem:[%s1 + $0x110] sm:$0xf]
  %v109 = vld [vmem:[%s1 + $0x118] sm:$0xf]
  %v110 = vld [vmem:[%s3] sm:$0xff]
  %v111 = vld [vmem:[%s3 + $0x8] sm:$0xff]
  %v112 = vld [vmem:[%s3 + $0x10] sm:$0xff]
  %v113 = vld [vmem:[%s3 + $0x18] sm:$0xff]
  %v114 = vld [vmem:[%s3 + $0x20] sm:$0xff]
  %v115 = vld [vmem:[%s3 + $0x28] sm:$0xff]
  %v116 = vld [vmem:[%s3 + $0x30] sm:$0xff]
  %v117 = vld [vmem:[%s3 + $0x38] sm:$0xff]
  %v118 = vld [vmem:[%s3 + $0x40] sm:$0xff]
  %v119 = vld [vmem:[%s3 + $0x48] sm:$0xff]
  %v120 = vld [vmem:[%s3 + $0x50] sm:$0xff]
  %v121 = vld [vmem:[%s3 + $0x58] sm:$0xff]
  %v122 = vld [vmem:[%s3 + $0x60] sm:$0xff]
  %v123 = vld [vmem:[%s3 + $0x68] sm:$0xff]
  %v124 = vld [vmem:[%s3 + $0x70] sm:$0xff]
  %v125 = vld [vmem:[%s3 + $0x78] sm:$0xff]
  %v126 = vld [vmem:[%s3 + $0x80] sm:$0xff]
  %v127 = vld [vmem:[%s3 + $0x88] sm:$0xff]
  %v128 = vld [vmem:[%s3 + $0x90] sm:$0xff]
  %v129 = vld [vmem:[%s3 + $0x98] sm:$0xff]
  %v130 = vld [vmem:[%s3 + $0xa0] sm:$0xff]
  %v131 = vld [vmem:[%s3 + $0xa8] sm:$0xff]
  %v132 = vld [vmem:[%s3 + $0xb0] sm:$0xff]
  %v133 = vld [vmem:[%s3 + $0xb8] sm:$0xff]
  %v134 = vld [vmem:[%s3 + $0xc0] sm:$0xff]
  %v135 = vld [vmem:[%s3 + $0xc8] sm:$0xff]
  %v136 = vld [vmem:[%s3 + $0xd0] sm:$0xff]
  %v137 = vld [vmem:[%s3 + $0xd8] sm:$0xff]
  %v138 = vld [vmem:[%s3 + $0xe0] sm:$0xff]
  %v139 = vld [vmem:[%s3 + $0xe8] sm:$0xff]
  %v140 = vld [vmem:[%s3 + $0xf0] sm:$0xff]
  %v141 = vld [vmem:[%s3 + $0xf8] sm:$0xff]
  %v142 = vld [vmem:[%s3 + $0x100] sm:$0xff]
  %v143 = vld [vmem:[%s3 + $0x108] sm:$0xff]
  %v144 = vld [vmem:[%s3 + $0x110] sm:$0xff]
  %v145 = vld [vmem:[%s3 + $0x118] sm:$0xff]
  %v146 = vld [vmem:[%s3 + $0x120] sm:$0xff]
  %v147 = vld [vmem:[%s3 + $0x128] sm:$0xff]
  %v148 = vld [vmem:[%s3 + $0x130] sm:$0xff]
  %v149 = vld [vmem:[%s3 + $0x138] sm:$0xff]
  %v150 = vld [vmem:[%s3 + $0x140] sm:$0xff]
  %v151 = vld [vmem:[%s3 + $0x148] sm:$0xff]
  %v152 = vld [vmem:[%s3 + $0x150] sm:$0xff]
  %v153 = vld [vmem:[%s3 + $0x158] sm:$0xff]
  %v154 = vld [vmem:[%s3 + $0x160] sm:$0xff]
  %v155 = vld [vmem:[%s3 + $0x168] sm:$0xff]
  %v156 = vld [vmem:[%s3 + $0x170] sm:$0xff]
  %v157 = vld [vmem:[%s3 + $0x178] sm:$0xff]
  %v158 = vld [vmem:[%s3 + $0x180] sm:$0xff]
  %v159 = vld [vmem:[%s3 + $0x188] sm:$0xff]
  %v160 = vld [vmem:[%s3 + $0x190] sm:$0xff]
  %v161 = vld [vmem:[%s3 + $0x198] sm:$0xff]
  %v162 = vld [vmem:[%s3 + $0x1a0] sm:$0xff]
  %v163 = vld [vmem:[%s3 + $0x1a8] sm:$0xff]
  %v164 = vld [vmem:[%s3 + $0x1b0] sm:$0xff]
  %v165 = vld [vmem:[%s3 + $0x1b8] sm:$0xff]
  %v166 = vld [vmem:[%s3 + $0x1c0] sm:$0xff]
  %v167 = vld [vmem:[%s3 + $0x1c8] sm:$0xff]
  %v168 = vld [vmem:[%s3 + $0x1d0] sm:$0xff]
  %v169 = vld [vmem:[%s3 + $0x1d8] sm:$0xff]
  %v170 = vld [vmem:[%s3 + $0x1e0] sm:$0xff]
  %v171 = vld [vmem:[%s3 + $0x1e8] sm:$0xff]
  %v172 = vld [vmem:[%s3 + $0x1f0] sm:$0xff]
  %v173 = vld [vmem:[%s3 + $0x1f8] sm:$0xff]
  %v174 = vld [vmem:[%s3 + $0x200] sm:$0xff]
  %v175 = vld [vmem:[%s3 + $0x208] sm:$0xff]
  %v176 = vld [vmem:[%s3 + $0x210] sm:$0xff]
  %v177 = vld [vmem:[%s3 + $0x218] sm:$0xff]
  %v178 = vld [vmem:[%s3 + $0x220] sm:$0xff]
  %v179 = vld [vmem:[%s3 + $0x228] sm:$0xff]
  %v180 = vld [vmem:[%s3 + $0x230] sm:$0xff]
  %v181 = vld [vmem:[%s3 + $0x238] sm:$0xff]
  %v182 = vld [vmem:[%s3 + $0x240] sm:$0xff]
  %v183 = vld [vmem:[%s3 + $0x248] sm:$0xff]
  %v184 = vld [vmem:[%s3 + $0x250] sm:$0xff]
  %v185 = vld [vmem:[%s3 + $0x258] sm:$0xff]
  %v186 = vld [vmem:[%s3 + $0x260] sm:$0xff]
  %v187 = vld [vmem:[%s3 + $0x268] sm:$0xff]
  %v188 = vld [vmem:[%s3 + $0x270] sm:$0xff]
  %v189 = vld [vmem:[%s3 + $0x278] sm:$0xff]
  %v190 = vld [vmem:[%s3 + $0x280] sm:$0xff]
  %v191 = vld [vmem:[%s3 + $0x288] sm:$0xff]
  %v192 = vld [vmem:[%s3 + $0x290] sm:$0xff]
  %v193 = vld [vmem:[%s3 + $0x298] sm:$0xff]
  %v194 = vld [vmem:[%s3 + $0x2a0] sm:$0xff]
  %v195 = vld [vmem:[%s3 + $0x2a8] sm:$0xff]
  %v196 = vld [vmem:[%s3 + $0x2b0] sm:$0xff]
  %v197 = vld [vmem:[%s3 + $0x2b8] sm:$0xff]
  %v198 = vld [vmem:[%s3 + $0x2c0] sm:$0xff]
  %v199 = vld [vmem:[%s3 + $0x2c8] sm:$0xff]
  %v200 = vld [vmem:[%s3 + $0x2d0] sm:$0xff]
  %v201 = vld [vmem:[%s3 + $0x2d8] sm:$0xff]
  %v202 = vld [vmem:[%s3 + $0x2e0] sm:$0xff]
  %v203 = vld [vmem:[%s3 + $0x2e8] sm:$0xff]
  %v204 = vld [vmem:[%s3 + $0x2f0] sm:$0xff]
  %v205 = vld [vmem:[%s3 + $0x2f8] sm:$0xff]
  %v206 = vld [vmem:[%s3 + $0x300] sm:$0xff]
  %v207 = vld [vmem:[%s3 + $0x308] sm:$0xff]
  %v208 = vld [vmem:[%s3 + $0x310] sm:$0xff]
  %v209 = vld [vmem:[%s3 + $0x318] sm:$0xff]
  %v210 = vld [vmem:[%s3 + $0x320] sm:$0xff]
  %v211 = vld [vmem:[%s3 + $0x328] sm:$0xff]
  %v212 = vld [vmem:[%s3 + $0x330] sm:$0xff]
  %v213 = vld [vmem:[%s3 + $0x338] sm:$0xff]
  %v214 = vld [vmem:[%s3 + $0x340] sm:$0xff]
  %v215 = vld [vmem:[%s3 + $0x348] sm:$0xff]
  %v216 = vld [vmem:[%s3 + $0x350] sm:$0xff]
  %v217 = vld [vmem:[%s3 + $0x358] sm:$0xff]
  %v218 = vld [vmem:[%s3 + $0x360] sm:$0xff]
  %v219 = vld [vmem:[%s3 + $0x368] sm:$0xff]
  %v220 = vld [vmem:[%s3 + $0x370] sm:$0xff]
  %v221 = vld [vmem:[%s3 + $0x378] sm:$0xff]
  %v222 = vld [vmem:[%s3 + $0x380] sm:$0xff]
  %v223 = vld [vmem:[%s3 + $0x388] sm:$0xff]
  %v224 = vld [vmem:[%s3 + $0x390] sm:$0xff]
  %v225 = vld [vmem:[%s3 + $0x398] sm:$0xff]
  %v226 = vld [vmem:[%s3 + $0x3a0] sm:$0xff]
  %v227 = vld [vmem:[%s3 + $0x3a8] sm:$0xff]
  %v228 = vld [vmem:[%s3 + $0x3b0] sm:$0xff]
  %v229 = vld [vmem:[%s3 + $0x3b8] sm:$0xff]
  %v230 = vld [vmem:[%s3 + $0x3c0] sm:$0xff]
  %v231 = vld [vmem:[%s3 + $0x3c8] sm:$0xff]
  %v232 = vld [vmem:[%s3 + $0x3d0] sm:$0xff]
  %v233 = vld [vmem:[%s3 + $0x3d8] sm:$0xff]
  %v234 = vld [vmem:[%s3 + $0x3e0] sm:$0xff]
  %v235 = vld [vmem:[%s3 + $0x3e8] sm:$0xff]
  %v236 = vld [vmem:[%s3 + $0x3f0] sm:$0xff]
  %v237 = vld [vmem:[%s3 + $0x3f8] sm:$0xff]
  %v238 = vld [vmem:[%s3 + $0x400] sm:$0xff]
  %v239 = vld [vmem:[%s3 + $0x408] sm:$0xff]
  %v240 = vld [vmem:[%s3 + $0x410] sm:$0xff]
  %v241 = vld [vmem:[%s3 + $0x418] sm:$0xff]
  %v242 = vld [vmem:[%s3 + $0x420] sm:$0xff]
  %v243 = vld [vmem:[%s3 + $0x428] sm:$0xff]
  %v244 = vld [vmem:[%s3 + $0x430] sm:$0xff]
  %v245 = vld [vmem:[%s3 + $0x438] sm:$0xff]
  %v246 = vld [vmem:[%s3 + $0x440] sm:$0xff]
  %v247 = vld [vmem:[%s3 + $0x448] sm:$0xff]
  %v248 = vld [vmem:[%s3 + $0x450] sm:$0xff]
  %v249 = vld [vmem:[%s3 + $0x458] sm:$0xff]
  %v250 = vld [vmem:[%s3 + $0x460] sm:$0xff]
  %v251 = vld [vmem:[%s3 + $0x468] sm:$0xff]
  %v252 = vld [vmem:[%s3 + $0x470] sm:$0xff]
  %v253 = vld [vmem:[%s3 + $0x478] sm:$0xff]
  %v254 = vld [vmem:[%s3 + $0x480] sm:$0xff]
  %v255 = vld [vmem:[%s3 + $0x488] sm:$0xff]
  %v256 = vld [vmem:[%s3 + $0x490] sm:$0xff]
  %v257 = vld [vmem:[%s3 + $0x498] sm:$0xff]
  %v258 = vld [vmem:[%s3 + $0x4a0] sm:$0xff]
  %v259 = vld [vmem:[%s3 + $0x4a8] sm:$0xff]
  %v260 = vld [vmem:[%s3 + $0x4b0] sm:$0xff]
  %v261 = vld [vmem:[%s3 + $0x4b8] sm:$0xff]
  %v262 = vld [vmem:[%s3 + $0x4c0] sm:$0xff]
  %v263 = vld [vmem:[%s3 + $0x4c8] sm:$0xff]
  %v264 = vld [vmem:[%s3 + $0x4d0] sm:$0xff]
  %v265 = vld [vmem:[%s3 + $0x4d8] sm:$0xff]
  %v266 = vld [vmem:[%s3 + $0x4e0] sm:$0xff]
  %v267 = vld [vmem:[%s3 + $0x4e8] sm:$0xff]
  %v268 = vld [vmem:[%s3 + $0x4f0] sm:$0xff]
  %v269 = vld [vmem:[%s3 + $0x4f8] sm:$0xff]
  %v270 = vld [vmem:[%s5] sm:$0xff]
  %v271 = vld [vmem:[%s5 + $0x8] sm:$0xff]
  %v272 = vld [vmem:[%s5 + $0x10] sm:$0xff]
  %v273 = vld [vmem:[%s5 + $0x18] sm:$0xff]
  %v274 = vld [vmem:[%s5 + $0x20] sm:$0xff]
  %v275 = vld [vmem:[%s5 + $0x28] sm:$0xff]
  %v276 = vld [vmem:[%s5 + $0x30] sm:$0xff]
  %v277 = vld [vmem:[%s5 + $0x38] sm:$0xff]
  %v278 = vld [vmem:[%s5 + $0x40] sm:$0xff]
  %v279 = vld [vmem:[%s5 + $0x48] sm:$0xff]
  %v280 = vld [vmem:[%s5 + $0x50] sm:$0xff]
  %v281 = vld [vmem:[%s5 + $0x58] sm:$0xff]
  %v282 = vld [vmem:[%s5 + $0x60] sm:$0xff]
  %v283 = vld [vmem:[%s5 + $0x68] sm:$0xff]
  %v284 = vld [vmem:[%s5 + $0x70] sm:$0xff]
  %v285 = vld [vmem:[%s5 + $0x78] sm:$0xff]
  %v286 = vld [vmem:[%s5 + $0x80] sm:$0xff]
  %v287 = vld [vmem:[%s5 + $0x88] sm:$0xff]
  %v288 = vld [vmem:[%s5 + $0x90] sm:$0xff]
  %v289 = vld [vmem:[%s5 + $0x98] sm:$0xff]
  %v290 = vld [vmem:[%s5 + $0xa0] sm:$0xff]
  %v291 = vld [vmem:[%s5 + $0xa8] sm:$0xff]
  %v292 = vld [vmem:[%s5 + $0xb0] sm:$0xff]
  %v293 = vld [vmem:[%s5 + $0xb8] sm:$0xff]
  %v294 = vld [vmem:[%s5 + $0xc0] sm:$0xff]
  %v295 = vld [vmem:[%s5 + $0xc8] sm:$0xff]
  %v296 = vld [vmem:[%s5 + $0xd0] sm:$0xff]
  %v297 = vld [vmem:[%s5 + $0xd8] sm:$0xff]
  %v298 = vld [vmem:[%s5 + $0xe0] sm:$0xff]
  %v299 = vld [vmem:[%s5 + $0xe8] sm:$0xff]
  %v300 = vld [vmem:[%s5 + $0xf0] sm:$0xff]
  %v301 = vld [vmem:[%s5 + $0xf8] sm:$0xff]
  %v302 = vld [vmem:[%s5 + $0x100] sm:$0xff]
  %v303 = vld [vmem:[%s5 + $0x108] sm:$0xff]
  %v304 = vld [vmem:[%s5 + $0x110] sm:$0xff]
  %v305 = vld [vmem:[%s5 + $0x118] sm:$0xff]
  %v306 = vld [vmem:[%s5 + $0x120] sm:$0xff]
  %v307 = vld [vmem:[%s5 + $0x128] sm:$0xff]
  %v308 = vld [vmem:[%s5 + $0x130] sm:$0xff]
  %v309 = vld [vmem:[%s5 + $0x138] sm:$0xff]
  %v310 = vld [vmem:[%s5 + $0x140] sm:$0xff]
  %v311 = vld [vmem:[%s5 + $0x148] sm:$0xff]
  %v312 = vld [vmem:[%s5 + $0x150] sm:$0xff]
  %v313 = vld [vmem:[%s5 + $0x158] sm:$0xff]
  %v314 = vld [vmem:[%s5 + $0x160] sm:$0xff]
  %v315 = vld [vmem:[%s5 + $0x168] sm:$0xff]
  %v316 = vld [vmem:[%s5 + $0x170] sm:$0xff]
  %v317 = vld [vmem:[%s5 + $0x178] sm:$0xff]
  %v318 = vld [vmem:[%s5 + $0x180] sm:$0xff]
  %v319 = vld [vmem:[%s5 + $0x188] sm:$0xff]
  %v320 = vld [vmem:[%s5 + $0x190] sm:$0xff]
  %v321 = vld [vmem:[%s5 + $0x198] sm:$0xff]
  %v322 = vld [vmem:[%s5 + $0x1a0] sm:$0xff]
  %v323 = vld [vmem:[%s5 + $0x1a8] sm:$0xff]
  %v324 = vld [vmem:[%s5 + $0x1b0] sm:$0xff]
  %v325 = vld [vmem:[%s5 + $0x1b8] sm:$0xff]
  %v326 = vld [vmem:[%s5 + $0x1c0] sm:$0xff]
  %v327 = vld [vmem:[%s5 + $0x1c8] sm:$0xff]
  %v328 = vld [vmem:[%s5 + $0x1d0] sm:$0xff]
  %v329 = vld [vmem:[%s5 + $0x1d8] sm:$0xff]
  %v330 = vld [vmem:[%s5 + $0x1e0] sm:$0xff]
  %v331 = vld [vmem:[%s5 + $0x1e8] sm:$0xff]
  %v332 = vld [vmem:[%s5 + $0x1f0] sm:$0xff]
  %v333 = vld [vmem:[%s5 + $0x1f8] sm:$0xff]
  %vm334 = vcmask 97280
  %v336 = vsel %vm334, %v27, 0
  %v339 = vsel %vm334, %v29, 0
  %v342 = vsel %vm334, %v31, 0
  %v345 = vsel %vm334, %v33, 0
  %v348 = vsel %vm334, %v35, 0
  %v351 = vsel %vm334, %v37, 0
  %v354 = vsel %vm334, %v39, 0
  %v357 = vsel %vm334, %v41, 0
  %v360 = vsel %vm334, %v43, 0
  %v363 = vsel %vm334, %v45, 0
  %v366 = vsel %vm334, %v47, 0
  %v369 = vsel %vm334, %v49, 0
  %v372 = vsel %vm334, %v51, 0
  %v375 = vsel %vm334, %v53, 0
  %v378 = vsel %vm334, %v55, 0
  %v381 = vsel %vm334, %v57, 0
  %v384 = vsel %vm334, %v59, 0
  %v387 = vsel %vm334, %v61, 0
  %v390 = vsel %vm334, %v63, 0
  %v393 = vsel %vm334, %v65, 0
  %v396 = vsel %vm334, %v67, 0
  %v399 = vsel %vm334, %v69, 0
  %v402 = vsel %vm334, %v71, 0
  %v405 = vsel %vm334, %v73, 0
  %vm407 = vcmask 1043456
  %v409 = vsel %vm407, %v108, 0
  %v412 = vsel %vm407, %v109, 0
  %414 = vmatprep.subr.mxu0 %v75
  %415 = vmatpush1.msra.mxu0 %v74
  %416 = vmatprep.subr.mxu0 %v77
  %417 = vmatpush1.msra.mxu0 %v76
  %418 = vmatprep.subr.mxu0 %v79
  %419 = vmatpush1.msra.mxu0 %v78
  %420 = vmatprep.subr.mxu0 %v81
  %421 = vmatpush1.msra.mxu0 %v80
  %422 = vmatprep.subr.mxu0 %v83
  %423 = vmatpush1.msra.mxu0 %v82
  %424 = vmatprep.subr.mxu0 %v85
  %425 = vmatpush1.msra.mxu0 %v84
  %426 = vmatprep.subr.mxu0 %v87
  %427 = vmatpush1.msra.mxu0 %v86
  %428 = vmatprep.subr.mxu0 %v89
  %429 = vmatpush1.msra.mxu0 %v88
  %430 = vmatprep.subr.mxu0 %v91
  %431 = vmatpush1.msra.mxu0 %v90
  %432 = vmatprep.subr.mxu0 %v93
  %433 = vmatpush1.msra.mxu0 %v92
  %434 = vmatprep.subr.mxu0 %v95
  %435 = vmatpush1.msra.mxu0 %v94
  %436 = vmatprep.subr.mxu0 %v97
  %437 = vmatpush1.msra.mxu0 %v96
  %438 = vmatprep.subr.mxu0 %v99
  %439 = vmatpush1.msra.mxu0 %v98
  %440 = vmatprep.subr.mxu0 %v101
  %441 = vmatpush1.msra.mxu0 %v100
  %442 = vmatprep.subr.mxu0 %v103
  %443 = vmatpush1.msra.mxu0 %v102
  %444 = vmatprep.subr.mxu0 %v105
  %445 = vmatpush1.msra.mxu0 %v104
  %446 = vmatprep.subr.mxu0 %v107
  %447 = vmatpush1.msra.mxu0 %v106
  %448 = vmatprep.subr.mxu0 %v412
  %449 = vmatpush1.msra.mxu0 %v409
  %450 = vmatprep.subr.mxu0 0.0
  %451 = vmatpush1.msra.mxu0 0.0
  %452 = vmatprep.subr.mxu0 0.0
  %453 = vmatpush1.msra.mxu0 0.0
  %454 = vmatprep.subr.mxu0 0.0
  %455 = vmatpush1.msra.mxu0 0.0
  %456 = vmatprep.subr.mxu0 0.0
  %457 = vmatpush1.msra.mxu0 0.0
  %458 = vmatprep.subr.mxu0 0.0
  %459 = vmatpush1.msra.mxu0 0.0
  %460 = vmatprep.subr.mxu0 0.0
  %461 = vmatpush1.msra.mxu0 0.0
  %462 = vmatprep.subr.mxu0 0.0
  %463 = vmatpush1.msra.mxu0 0.0
  %464 = vmatprep.subr.mxu0 0.0
  %465 = vmatpush1.msra.mxu0 0.0
  %466 = vmatprep.subr.mxu0 0.0
  %467 = vmatpush1.msra.mxu0 0.0
  %468 = vmatprep.subr.mxu0 0.0
  %469 = vmatpush1.msra.mxu0 0.0
  %470 = vmatprep.subr.mxu0 0.0
  %471 = vmatpush1.msra.mxu0 0.0
  %472 = vmatprep.subr.mxu0 0.0
  %473 = vmatpush1.msra.mxu0 0.0
  %474 = vmatprep.subr.mxu0 0.0
  %475 = vmatpush1.msra.mxu0 0.0
  %476 = vmatprep.subr.mxu0 0.0
  %477 = vmatpush1.msra.mxu0 0.0
  %478 = vmatprep.mubr.f32.mxu0 %v336
  %479 = vmatmul.mubr.f32.gmra.mrb[0].mxu0 %v26
  %v480 = vpop.f32.mrb[0].mxu0
  %v481 = vadd.f32 0.0, %v480
  %v482 = vpop.f32.mrb[0].mxu0
  %v483 = vadd.f32 0.0, %v482
  %484 = vmatprep.mubr.f32.mxu0 %v339
  %485 = vmatmul.mubr.f32.gmra.mrb[0].mxu0 %v28
  %v486 = vpop.f32.mrb[0].mxu0
  %v487 = vadd.f32 0.0, %v486
  %v488 = vpop.f32.mrb[0].mxu0
  %v489 = vadd.f32 0.0, %v488
  %490 = vmatprep.mubr.f32.mxu0 %v342
  %491 = vmatmul.mubr.f32.gmra.mrb[0].mxu0 %v30
  %v492 = vpop.f32.mrb[0].mxu0
  %v493 = vadd.f32 0.0, %v492
  %v494 = vpop.f32.mrb[0].mxu0
  %v495 = vadd.f32 0.0, %v494
  %496 = vmatprep.mubr.f32.mxu0 %v345
  %497 = vmatmul.mubr.f32.gmra.mrb[0].mxu0 %v32
  %v498 = vpop.f32.mrb[0].mxu0
  %v499 = vadd.f32 0.0, %v498
  %v500 = vpop.f32.mrb[0].mxu0
  %v501 = vadd.f32 0.0, %v500
  %502 = vmatprep.mubr.f32.mxu0 %v348
  %503 = vmatmul.mubr.f32.gmra.mrb[0].mxu0 %v34
  %v504 = vpop.f32.mrb[0].mxu0
  %v505 = vadd.f32 0.0, %v504
  %v506 = vpop.f32.mrb[0].mxu0
  %v507 = vadd.f32 0.0, %v506
  %508 = vmatprep.mubr.f32.mxu0 %v351
  %509 = vmatmul.mubr.f32.gmra.mrb[0].mxu0 %v36
  %v510 = vpop.f32.mrb[0].mxu0
  %v511 = vadd.f32 0.0, %v510
  %v512 = vpop.f32.mrb[0].mxu0
  %v513 = vadd.f32 0.0, %v512
  %514 = vmatprep.mubr.f32.mxu0 %v354
  %515 = vmatmul.mubr.f32.gmra.mrb[0].mxu0 %v38
  %v516 = vpop.f32.mrb[0].mxu0
  %v517 = vadd.f32 0.0, %v516
  %v518 = vpop.f32.mrb[0].mxu0
  %v519 = vadd.f32 0.0, %v518
  %520 = vmatprep.mubr.f32.mxu0 %v357
  %521 = vmatmul.mubr.f32.gmra.mrb[0].mxu0 %v40
  %v522 = vpop.f32.mrb[0].mxu0
  %v523 = vadd.f32 0.0, %v522
  %v524 = vpop.f32.mrb[0].mxu0
  %v525 = vadd.f32 0.0, %v524
  %526 = vmatprep.mubr.f32.mxu0 %v360
  %527 = vmatmul.mubr.f32.gmra.mrb[0].mxu0 %v42
  %v528 = vpop.f32.mrb[0].mxu0
  %v529 = vadd.f32 0.0, %v528
  %v530 = vpop.f32.mrb[0].mxu0
  %v531 = vadd.f32 0.0, %v530
  %532 = vmatprep.mubr.f32.mxu0 %v363
  %533 = vmatmul.mubr.f32.gmra.mrb[0].mxu0 %v44
  %v534 = vpop.f32.mrb[0].mxu0
  %v535 = vadd.f32 0.0, %v534
  %v536 = vpop.f32.mrb[0].mxu0
  %v537 = vadd.f32 0.0, %v536
  %538 = vmatprep.mubr.f32.mxu0 %v366
  %539 = vmatmul.mubr.f32.gmra.mrb[0].mxu0 %v46
  %v540 = vpop.f32.mrb[0].mxu0
  %v541 = vadd.f32 0.0, %v540
  %v542 = vpop.f32.mrb[0].mxu0
  %v543 = vadd.f32 0.0, %v542
  %544 = vmatprep.mubr.f32.mxu0 %v369
  %545 = vmatmul.mubr.f32.gmra.mrb[0].mxu0 %v48
  %v546 = vpop.f32.mrb[0].mxu0
  %v547 = vadd.f32 0.0, %v546
  %v548 = vpop.f32.mrb[0].mxu0
  %v549 = vadd.f32 0.0, %v548
  %550 = vmatprep.mubr.f32.mxu0 %v372
  %551 = vmatmul.mubr.f32.gmra.mrb[0].mxu0 %v50
  %v552 = vpop.f32.mrb[0].mxu0
  %v553 = vadd.f32 0.0, %v552
  %v554 = vpop.f32.mrb[0].mxu0
  %v555 = vadd.f32 0.0, %v554
  %556 = vmatprep.mubr.f32.mxu0 %v375
  %557 = vmatmul.mubr.f32.gmra.mrb[0].mxu0 %v52
  %v558 = vpop.f32.mrb[0].mxu0
  %v559 = vadd.f32 0.0, %v558
  %v560 = vpop.f32.mrb[0].mxu0
  %v561 = vadd.f32 0.0, %v560
  %562 = vmatprep.mubr.f32.mxu0 %v378
  %563 = vmatmul.mubr.f32.gmra.mrb[0].mxu0 %v54
  %v564 = vpop.f32.mrb[0].mxu0
  %v565 = vadd.f32 0.0, %v564
  %v566 = vpop.f32.mrb[0].mxu0
  %v567 = vadd.f32 0.0, %v566
  %568 = vmatprep.mubr.f32.mxu0 %v381
  %569 = vmatmul.mubr.f32.gmra.mrb[0].mxu0 %v56
  %v570 = vpop.f32.mrb[0].mxu0
  %v571 = vadd.f32 0.0, %v570
  %v572 = vpop.f32.mrb[0].mxu0
  %v573 = vadd.f32 0.0, %v572
  %574 = vmatprep.mubr.f32.mxu0 %v384
  %575 = vmatmul.mubr.f32.gmra.mrb[0].mxu0 %v58
  %v576 = vpop.f32.mrb[0].mxu0
  %v577 = vadd.f32 0.0, %v576
  %v578 = vpop.f32.mrb[0].mxu0
  %v579 = vadd.f32 0.0, %v578
  %580 = vmatprep.mubr.f32.mxu0 %v387
  %581 = vmatmul.mubr.f32.gmra.mrb[0].mxu0 %v60
  %v582 = vpop.f32.mrb[0].mxu0
  %v583 = vadd.f32 0.0, %v582
  %v584 = vpop.f32.mrb[0].mxu0
  %v585 = vadd.f32 0.0, %v584
  %586 = vmatprep.mubr.f32.mxu0 %v390
  %587 = vmatmul.mubr.f32.gmra.mrb[0].mxu0 %v62
  %v588 = vpop.f32.mrb[0].mxu0
  %v589 = vadd.f32 0.0, %v588
  %v590 = vpop.f32.mrb[0].mxu0
  %v591 = vadd.f32 0.0, %v590
  %592 = vmatprep.mubr.f32.mxu0 %v393
  %593 = vmatmul.mubr.f32.gmra.mrb[0].mxu0 %v64
  %v594 = vpop.f32.mrb[0].mxu0
  %v595 = vadd.f32 0.0, %v594
  %v596 = vpop.f32.mrb[0].mxu0
  %v597 = vadd.f32 0.0, %v596
  %598 = vmatprep.mubr.f32.mxu0 %v396
  %599 = vmatmul.mubr.f32.gmra.mrb[0].mxu0 %v66
  %v600 = vpop.f32.mrb[0].mxu0
  %v601 = vadd.f32 0.0, %v600
  %v602 = vpop.f32.mrb[0].mxu0
  %v603 = vadd.f32 0.0, %v602
  %604 = vmatprep.mubr.f32.mxu0 %v399
  %605 = vmatmul.mubr.f32.gmra.mrb[0].mxu0 %v68
  %v606 = vpop.f32.mrb[0].mxu0
  %v607 = vadd.f32 0.0, %v606
  %v608 = vpop.f32.mrb[0].mxu0
  %v609 = vadd.f32 0.0, %v608
  %610 = vmatprep.mubr.f32.mxu0 %v402
  %611 = vmatmul.mubr.f32.gmra.mrb[0].mxu0 %v70
  %v612 = vpop.f32.mrb[0].mxu0
  %v613 = vadd.f32 0.0, %v612
  %v614 = vpop.f32.mrb[0].mxu0
  %v615 = vadd.f32 0.0, %v614
  %616 = vmatprep.mubr.f32.mxu0 %v405
  %617 = vmatmul.mubr.f32.gmra.mrb[0].mxu0 %v72
  %v618 = vpop.f32.mrb[0].mxu0
  %v619 = vadd.f32 0.0, %v618
  %v620 = vpop.f32.mrb[0].mxu0
  %v621 = vadd.f32 0.0, %v620
  %622 = vdwg.mxu0
  %v623 = vmax.f32 %v481, %v487
  %v624 = vmax.f32 %v483, %v489
  %v625 = vmax.f32 %v493, %v499
  %v626 = vmax.f32 %v495, %v501
  %v627 = vmax.f32 %v505, %v511
  %v628 = vmax.f32 %v507, %v513
  %v629 = vmax.f32 %v517, %v523
  %v630 = vmax.f32 %v519, %v525
  %v631 = vmax.f32 %v529, %v535
  %v632 = vmax.f32 %v531, %v537
  %v633 = vmax.f32 %v541, %v547
  %v634 = vmax.f32 %v543, %v549
  %v635 = vmax.f32 %v553, %v559
  %v636 = vmax.f32 %v555, %v561
  %v637 = vmax.f32 %v565, %v571
  %v638 = vmax.f32 %v567, %v573
  %v639 = vmax.f32 %v577, %v583
  %v640 = vmax.f32 %v579, %v585
  %v641 = vmax.f32 %v589, %v595
  %v642 = vmax.f32 %v591, %v597
  %v643 = vmax.f32 %v601, %v607
  %v644 = vmax.f32 %v603, %v609
  %v645 = vmax.f32 %v613, %v619
  %v646 = vmax.f32 %v615, %v621
  %v647 = vmax.f32 %v623, %v624
  %v648 = vmax.f32 %v625, %v626
  %v649 = vmax.f32 %v627, %v628
  %v650 = vmax.f32 %v629, %v630
  %v651 = vmax.f32 %v631, %v632
  %v652 = vmax.f32 %v633, %v634
  %v653 = vmax.f32 %v635, %v636
  %v654 = vmax.f32 %v637, %v638
  %v655 = vmax.f32 %v639, %v640
  %v656 = vmax.f32 %v641, %v642
  %v657 = vmax.f32 %v643, %v644
  %v658 = vmax.f32 %v645, %v646
  %v659 = vld [vmem:[%s2] sm:$0x1]
  %v661 = vlaneseq
  %v662 = vshrl.u32 %v661, 7
  %v663 = vsub.s32 0, %v662
  %v664 = vrot.slane %v659, %v663
  %v666 = vadd.f32 %v647, %v664
  %v667 = vadd.f32 %v648, %v664
  %v668 = vadd.f32 %v649, %v664
  %v669 = vadd.f32 %v650, %v664
  %v670 = vadd.f32 %v651, %v664
  %v671 = vadd.f32 %v652, %v664
  %v672 = vadd.f32 %v653, %v664
  %v673 = vadd.f32 %v654, %v664
  %v674 = vadd.f32 %v655, %v664
  %v675 = vadd.f32 %v656, %v664
  %v676 = vadd.f32 %v657, %v664
  %v677 = vadd.f32 %v658, %v664
  %v678 = vmax.f32 %v666, 0.0
  %v679 = vmax.f32 %v667, 0.0
  %v680 = vmax.f32 %v668, 0.0
  %v681 = vmax.f32 %v669, 0.0
  %v682 = vmax.f32 %v670, 0.0
  %v683 = vmax.f32 %v671, 0.0
  %v684 = vmax.f32 %v672, 0.0
  %v685 = vmax.f32 %v673, 0.0
  %v686 = vmax.f32 %v674, 0.0
  %v687 = vmax.f32 %v675, 0.0
  %v688 = vmax.f32 %v676, 0.0
  %v689 = vmax.f32 %v677, 0.0
  %690 = vmatprep.subr.mxu0 %v143
  %691 = vmatpush1.msra.mxu0 %v142
  %692 = vmatprep.subr.mxu0 %v145
  %693 = vmatpush1.msra.mxu0 %v144
  %694 = vmatprep.subr.mxu0 %v147
  %695 = vmatpush1.msra.mxu0 %v146
  %696 = vmatprep.subr.mxu0 %v149
  %697 = vmatpush1.msra.mxu0 %v148
  %698 = vmatprep.subr.mxu0 %v151
  %699 = vmatpush1.msra.mxu0 %v150
  %700 = vmatprep.subr.mxu0 %v153
  %701 = vmatpush1.msra.mxu0 %v152
  %702 = vmatprep.subr.mxu0 %v155
  %703 = vmatpush1.msra.mxu0 %v154
  %704 = vmatprep.subr.mxu0 %v157
  %705 = vmatpush1.msra.mxu0 %v156
  %706 = vmatprep.subr.mxu0 %v159
  %707 = vmatpush1.msra.mxu0 %v158
  %708 = vmatprep.subr.mxu0 %v161
  %709 = vmatpush1.msra.mxu0 %v160
  %710 = vmatprep.subr.mxu0 %v163
  %711 = vmatpush1.msra.mxu0 %v162
  %712 = vmatprep.subr.mxu0 %v165
  %713 = vmatpush1.msra.mxu0 %v164
  %714 = vmatprep.subr.mxu0 %v167
  %715 = vmatpush1.msra.mxu0 %v166
  %716 = vmatprep.subr.mxu0 %v169
  %717 = vmatpush1.msra.mxu0 %v168
  %718 = vmatprep.subr.mxu0 %v171
  %719 = vmatpush1.msra.mxu0 %v170
  %720 = vmatprep.subr.mxu0 %v173
  %721 = vmatpush1.msra.mxu0 %v172
  %722 = vmatprep.subr.mxu0 0.0
  %723 = vmatpush1.msra.mxu0 0.0
  %724 = vmatprep.subr.mxu0 0.0
  %725 = vmatpush1.msra.mxu0 0.0
  %726 = vmatprep.subr.mxu0 0.0
  %727 = vmatpush1.msra.mxu0 0.0
  %728 = vmatprep.subr.mxu0 0.0
  %729 = vmatpush1.msra.mxu0 0.0
  %730 = vmatprep.subr.mxu0 0.0
  %731 = vmatpush1.msra.mxu0 0.0
  %732 = vmatprep.subr.mxu0 0.0
  %733 = vmatpush1.msra.mxu0 0.0
  %734 = vmatprep.subr.mxu0 0.0
  %735 = vmatpush1.msra.mxu0 0.0
  %736 = vmatprep.subr.mxu0 0.0
  %737 = vmatpush1.msra.mxu0 0.0
  %738 = vmatprep.subr.mxu0 0.0
  %739 = vmatpush1.msra.mxu0 0.0
  %740 = vmatprep.subr.mxu0 0.0
  %741 = vmatpush1.msra.mxu0 0.0
  %742 = vmatprep.subr.mxu0 0.0
  %743 = vmatpush1.msra.mxu0 0.0
  %744 = vmatprep.subr.mxu0 0.0
  %745 = vmatpush1.msra.mxu0 0.0
  %746 = vmatprep.subr.mxu0 0.0
  %747 = vmatpush1.msra.mxu0 0.0
  %748 = vmatprep.subr.mxu0 0.0
  %749 = vmatpush1.msra.mxu0 0.0
  %750 = vmatprep.subr.mxu0 0.0
  %751 = vmatpush1.msra.mxu0 0.0
  %752 = vmatprep.subr.mxu0 0.0
  %753 = vmatpush1.msra.mxu0 0.0
  %754 = vmatprep.mubr.f32.mxu0 0.0
  %755 = vmatmul.mubr.f32.gmra.mrb[0].mxu0 %v679
  %v756 = vpop.f32.mrb[0].mxu0
  %v757 = vadd.f32 0.0, %v756
  %v758 = vpop.f32.mrb[0].mxu0
  %v759 = vadd.f32 0.0, %v758
  %760 = vmatprep.mubr.f32.mxu0 0.0
  %761 = vmatmul.mubr.f32.gmra.mrb[0].mxu0 %v680
  %v762 = vpop.f32.mrb[0].mxu0
  %v763 = vadd.f32 0.0, %v762
  %v764 = vpop.f32.mrb[0].mxu0
  %v765 = vadd.f32 0.0, %v764
  %766 = vmatprep.mubr.f32.mxu0 0.0
  %767 = vmatmul.mubr.f32.gmra.mrb[0].mxu0 %v681
  %v768 = vpop.f32.mrb[0].mxu0
  %v769 = vadd.f32 0.0, %v768
  %v770 = vpop.f32.mrb[0].mxu0
  %v771 = vadd.f32 0.0, %v770
  %772 = vmatprep.mubr.f32.mxu0 0.0
  %773 = vmatmul.mubr.f32.gmra.mrb[0].mxu0 %v682
  %v774 = vpop.f32.mrb[0].mxu0
  %v775 = vadd.f32 0.0, %v774
  %v776 = vpop.f32.mrb[0].mxu0
  %v777 = vadd.f32 0.0, %v776
  %778 = vmatprep.mubr.f32.mxu0 0.0
  %779 = vmatmul.mubr.f32.gmra.mrb[0].mxu0 %v683
  %v780 = vpop.f32.mrb[0].mxu0
  %v781 = vadd.f32 0.0, %v780
  %v782 = vpop.f32.mrb[0].mxu0
  %v783 = vadd.f32 0.0, %v782
  %784 = vmatprep.mubr.f32.mxu0 0.0
  %785 = vmatmul.mubr.f32.gmra.mrb[0].mxu0 %v684
  %v786 = vpop.f32.mrb[0].mxu0
  %v787 = vadd.f32 0.0, %v786
  %v788 = vpop.f32.mrb[0].mxu0
  %v789 = vadd.f32 0.0, %v788
  %790 = vmatprep.mubr.f32.mxu0 0.0
  %791 = vmatmul.mubr.f32.gmra.mrb[0].mxu0 %v685
  %v792 = vpop.f32.mrb[0].mxu0
  %v793 = vadd.f32 0.0, %v792
  %v794 = vpop.f32.mrb[0].mxu0
  %v795 = vadd.f32 0.0, %v794
  %796 = vmatprep.mubr.f32.mxu0 0.0
  %797 = vmatmul.mubr.f32.gmra.mrb[0].mxu0 %v686
  %v798 = vpop.f32.mrb[0].mxu0
  %v799 = vadd.f32 0.0, %v798
  %v800 = vpop.f32.mrb[0].mxu0
  %v801 = vadd.f32 0.0, %v800
  %802 = vdwg.mxu0
  %803 = vmatprep.subr.mxu0 %v111
  %804 = vmatpush1.msra.mxu0 %v110
  %805 = vmatprep.subr.mxu0 %v113
  %806 = vmatpush1.msra.mxu0 %v112
  %807 = vmatprep.subr.mxu0 %v115
  %808 = vmatpush1.msra.mxu0 %v114
  %809 = vmatprep.subr.mxu0 %v117
  %810 = vmatpush1.msra.mxu0 %v116
  %811 = vmatprep.subr.mxu0 %v119
  %812 = vmatpush1.msra.mxu0 %v118
  %813 = vmatprep.subr.mxu0 %v121
  %814 = vmatpush1.msra.mxu0 %v120
  %815 = vmatprep.subr.mxu0 %v123
  %816 = vmatpush1.msra.mxu0 %v122
  %817 = vmatprep.subr.mxu0 %v125
  %818 = vmatpush1.msra.mxu0 %v124
  %819 = vmatprep.subr.mxu0 %v127
  %820 = vmatpush1.msra.mxu0 %v126
  %821 = vmatprep.subr.mxu0 %v129
  %822 = vmatpush1.msra.mxu0 %v128
  %823 = vmatprep.subr.mxu0 %v131
  %824 = vmatpush1.msra.mxu0 %v130
  %825 = vmatprep.subr.mxu0 %v133
  %826 = vmatpush1.msra.mxu0 %v132
  %827 = vmatprep.subr.mxu0 %v135
  %828 = vmatpush1.msra.mxu0 %v134
  %829 = vmatprep.subr.mxu0 %v137
  %830 = vmatpush1.msra.mxu0 %v136
  %831 = vmatprep.subr.mxu0 %v139
  %832 = vmatpush1.msra.mxu0 %v138
  %833 = vmatprep.subr.mxu0 %v141
  %834 = vmatpush1.msra.mxu0 %v140
  %835 = vmatprep.subr.mxu0 0.0
  %836 = vmatpush1.msra.mxu0 0.0
  %837 = vmatprep.subr.mxu0 0.0
  %838 = vmatpush1.msra.mxu0 0.0
  %839 = vmatprep.subr.mxu0 0.0
  %840 = vmatpush1.msra.mxu0 0.0
  %841 = vmatprep.subr.mxu0 0.0
  %842 = vmatpush1.msra.mxu0 0.0
  %843 = vmatprep.subr.mxu0 0.0
  %844 = vmatpush1.msra.mxu0 0.0
  %845 = vmatprep.subr.mxu0 0.0
  %846 = vmatpush1.msra.mxu0 0.0
  %847 = vmatprep.subr.mxu0 0.0
  %848 = vmatpush1.msra.mxu0 0.0
  %849 = vmatprep.subr.mxu0 0.0
  %850 = vmatpush1.msra.mxu0 0.0
  %851 = vmatprep.subr.mxu0 0.0
  %852 = vmatpush1.msra.mxu0 0.0
  %853 = vmatprep.subr.mxu0 0.0
  %854 = vmatpush1.msra.mxu0 0.0
  %855 = vmatprep.subr.mxu0 0.0
  %856 = vmatpush1.msra.mxu0 0.0
  %857 = vmatprep.subr.mxu0 0.0
  %858 = vmatpush1.msra.mxu0 0.0
  %859 = vmatprep.subr.mxu0 0.0
  %860 = vmatpush1.msra.mxu0 0.0
  %861 = vmatprep.subr.mxu0 0.0
  %862 = vmatpush1.msra.mxu0 0.0
  %863 = vmatprep.subr.mxu0 0.0
  %864 = vmatpush1.msra.mxu0 0.0
  %865 = vmatprep.subr.mxu0 0.0
  %866 = vmatpush1.msra.mxu0 0.0
  %867 = vmatprep.mubr.f32.mxu0 0.0
  %868 = vmatmul.mubr.f32.gmra.mrb[0].mxu0 %v678
  %v869 = vpop.f32.mrb[0].mxu0
  %v870 = vadd.f32 %v757, %v869
  %v871 = vpop.f32.mrb[0].mxu0
  %v872 = vadd.f32 %v759, %v871
  %873 = vmatprep.mubr.f32.mxu0 0.0
  %874 = vmatmul.mubr.f32.gmra.mrb[0].mxu0 %v679
  %v875 = vpop.f32.mrb[0].mxu0
  %v876 = vadd.f32 %v763, %v875
  %v877 = vpop.f32.mrb[0].mxu0
  %v878 = vadd.f32 %v765, %v877
  %879 = vmatprep.mubr.f32.mxu0 0.0
  %880 = vmatmul.mubr.f32.gmra.mrb[0].mxu0 %v680
  %v881 = vpop.f32.mrb[0].mxu0
  %v882 = vadd.f32 %v769, %v881
  %v883 = vpop.f32.mrb[0].mxu0
  %v884 = vadd.f32 %v771, %v883
  %885 = vmatprep.mubr.f32.mxu0 0.0
  %886 = vmatmul.mubr.f32.gmra.mrb[0].mxu0 %v681
  %v887 = vpop.f32.mrb[0].mxu0
  %v888 = vadd.f32 %v775, %v887
  %v889 = vpop.f32.mrb[0].mxu0
  %v890 = vadd.f32 %v777, %v889
  %891 = vmatprep.mubr.f32.mxu0 0.0
  %892 = vmatmul.mubr.f32.gmra.mrb[0].mxu0 %v682
  %v893 = vpop.f32.mrb[0].mxu0
  %v894 = vadd.f32 %v781, %v893
  %v895 = vpop.f32.mrb[0].mxu0
  %v896 = vadd.f32 %v783, %v895
  %897 = vmatprep.mubr.f32.mxu0 0.0
  %898 = vmatmul.mubr.f32.gmra.mrb[0].mxu0 %v683
  %v899 = vpop.f32.mrb[0].mxu0
  %v900 = vadd.f32 %v787, %v899
  %v901 = vpop.f32.mrb[0].mxu0
  %v902 = vadd.f32 %v789, %v901
  %903 = vmatprep.mubr.f32.mxu0 0.0
  %904 = vmatmul.mubr.f32.gmra.mrb[0].mxu0 %v684
  %v905 = vpop.f32.mrb[0].mxu0
  %v906 = vadd.f32 %v793, %v905
  %v907 = vpop.f32.mrb[0].mxu0
  %v908 = vadd.f32 %v795, %v907
  %909 = vmatprep.mubr.f32.mxu0 0.0
  %910 = vmatmul.mubr.f32.gmra.mrb[0].mxu0 %v685
  %v911 = vpop.f32.mrb[0].mxu0
  %v912 = vadd.f32 %v799, %v911
  %v913 = vpop.f32.mrb[0].mxu0
  %v914 = vadd.f32 %v801, %v913
  %915 = vdwg.mxu0
  %916 = vmatprep.subr.mxu0 %v175
  %917 = vmatpush1.msra.mxu0 %v174
  %918 = vmatprep.subr.mxu0 %v177
  %919 = vmatpush1.msra.mxu0 %v176
  %920 = vmatprep.subr.mxu0 %v179
  %921 = vmatpush1.msra.mxu0 %v178
  %922 = vmatprep.subr.mxu0 %v181
  %923 = vmatpush1.msra.mxu0 %v180
  %924 = vmatprep.subr.mxu0 %v183
  %925 = vmatpush1.msra.mxu0 %v182
  %926 = vmatprep.subr.mxu0 %v185
  %927 = vmatpush1.msra.mxu0 %v184
  %928 = vmatprep.subr.mxu0 %v187
  %929 = vmatpush1.msra.mxu0 %v186
  %930 = vmatprep.subr.mxu0 %v189
  %931 = vmatpush1.msra.mxu0 %v188
  %932 = vmatprep.subr.mxu0 %v191
  %933 = vmatpush1.msra.mxu0 %v190
  %934 = vmatprep.subr.mxu0 %v193
  %935 = vmatpush1.msra.mxu0 %v192
  %936 = vmatprep.subr.mxu0 %v195
  %937 = vmatpush1.msra.mxu0 %v194
  %938 = vmatprep.subr.mxu0 %v197
  %939 = vmatpush1.msra.mxu0 %v196
  %940 = vmatprep.subr.mxu0 %v199
  %941 = vmatpush1.msra.mxu0 %v198
  %942 = vmatprep.subr.mxu0 %v201
  %943 = vmatpush1.msra.mxu0 %v200
  %944 = vmatprep.subr.mxu0 %v203
  %945 = vmatpush1.msra.mxu0 %v202
  %946 = vmatprep.subr.mxu0 %v205
  %947 = vmatpush1.msra.mxu0 %v204
  %948 = vmatprep.subr.mxu0 0.0
  %949 = vmatpush1.msra.mxu0 0.0
  %950 = vmatprep.subr.mxu0 0.0
  %951 = vmatpush1.msra.mxu0 0.0
  %952 = vmatprep.subr.mxu0 0.0
  %953 = vmatpush1.msra.mxu0 0.0
  %954 = vmatprep.subr.mxu0 0.0
  %955 = vmatpush1.msra.mxu0 0.0
  %956 = vmatprep.subr.mxu0 0.0
  %957 = vmatpush1.msra.mxu0 0.0
  %958 = vmatprep.subr.mxu0 0.0
  %959 = vmatpush1.msra.mxu0 0.0
  %960 = vmatprep.subr.mxu0 0.0
  %961 = vmatpush1.msra.mxu0 0.0
  %962 = vmatprep.subr.mxu0 0.0
  %963 = vmatpush1.msra.mxu0 0.0
  %964 = vmatprep.subr.mxu0 0.0
  %965 = vmatpush1.msra.mxu0 0.0
  %966 = vmatprep.subr.mxu0 0.0
  %967 = vmatpush1.msra.mxu0 0.0
  %968 = vmatprep.subr.mxu0 0.0
  %969 = vmatpush1.msra.mxu0 0.0
  %970 = vmatprep.subr.mxu0 0.0
  %971 = vmatpush1.msra.mxu0 0.0
  %972 = vmatprep.subr.mxu0 0.0
  %973 = vmatpush1.msra.mxu0 0.0
  %974 = vmatprep.subr.mxu0 0.0
  %975 = vmatpush1.msra.mxu0 0.0
  %976 = vmatprep.subr.mxu0 0.0
  %977 = vmatpush1.msra.mxu0 0.0
  %978 = vmatprep.subr.mxu0 0.0
  %979 = vmatpush1.msra.mxu0 0.0
  %980 = vmatprep.mubr.f32.mxu0 0.0
  %981 = vmatmul.mubr.f32.gmra.mrb[0].mxu0 %v680
  %v982 = vpop.f32.mrb[0].mxu0
  %v983 = vadd.f32 0.0, %v982
  %v984 = vpop.f32.mrb[0].mxu0
  %v985 = vadd.f32 0.0, %v984
  %986 = vmatprep.mubr.f32.mxu0 0.0
  %987 = vmatmul.mubr.f32.gmra.mrb[0].mxu0 %v681
  %v988 = vpop.f32.mrb[0].mxu0
  %v989 = vadd.f32 0.0, %v988
  %v990 = vpop.f32.mrb[0].mxu0
  %v991 = vadd.f32 0.0, %v990
  %992 = vmatprep.mubr.f32.mxu0 0.0
  %993 = vmatmul.mubr.f32.gmra.mrb[0].mxu0 %v682
  %v994 = vpop.f32.mrb[0].mxu0
  %v995 = vadd.f32 0.0, %v994
  %v996 = vpop.f32.mrb[0].mxu0
  %v997 = vadd.f32 0.0, %v996
  %998 = vmatprep.mubr.f32.mxu0 0.0
  %999 = vmatmul.mubr.f32.gmra.mrb[0].mxu0 %v683
  %v1000 = vpop.f32.mrb[0].mxu0
  %v1001 = vadd.f32 0.0, %v1000
  %v1002 = vpop.f32.mrb[0].mxu0
  %v1003 = vadd.f32 0.0, %v1002
  %1004 = vmatprep.mubr.f32.mxu0 0.0
  %1005 = vmatmul.mubr.f32.gmra.mrb[0].mxu0 %v684
  %v1006 = vpop.f32.mrb[0].mxu0
  %v1007 = vadd.f32 0.0, %v1006
  %v1008 = vpop.f32.mrb[0].mxu0
  %v1009 = vadd.f32 0.0, %v1008
  %1010 = vmatprep.mubr.f32.mxu0 0.0
  %1011 = vmatmul.mubr.f32.gmra.mrb[0].mxu0 %v685
  %v1012 = vpop.f32.mrb[0].mxu0
  %v1013 = vadd.f32 0.0, %v1012
  %v1014 = vpop.f32.mrb[0].mxu0
  %v1015 = vadd.f32 0.0, %v1014
  %1016 = vmatprep.mubr.f32.mxu0 0.0
  %1017 = vmatmul.mubr.f32.gmra.mrb[0].mxu0 %v686
  %v1018 = vpop.f32.mrb[0].mxu0
  %v1019 = vadd.f32 0.0, %v1018
  %v1020 = vpop.f32.mrb[0].mxu0
  %v1021 = vadd.f32 0.0, %v1020
  %1022 = vmatprep.mubr.f32.mxu0 0.0
  %1023 = vmatmul.mubr.f32.gmra.mrb[0].mxu0 %v687
  %v1024 = vpop.f32.mrb[0].mxu0
  %v1025 = vadd.f32 0.0, %v1024
  %v1026 = vpop.f32.mrb[0].mxu0
  %v1027 = vadd.f32 0.0, %v1026
  %1028 = vdwg.mxu0
  %v1029 = vadd.f32 %v870, %v983
  %v1030 = vadd.f32 %v872, %v985
  %v1031 = vadd.f32 %v876, %v989
  %v1032 = vadd.f32 %v878, %v991
  %v1033 = vadd.f32 %v882, %v995
  %v1034 = vadd.f32 %v884, %v997
  %v1035 = vadd.f32 %v888, %v1001
  %v1036 = vadd.f32 %v890, %v1003
  %v1037 = vadd.f32 %v894, %v1007
  %v1038 = vadd.f32 %v896, %v1009
  %v1039 = vadd.f32 %v900, %v1013
  %v1040 = vadd.f32 %v902, %v1015
  %v1041 = vadd.f32 %v906, %v1019
  %v1042 = vadd.f32 %v908, %v1021
  %v1043 = vadd.f32 %v912, %v1025
  %v1044 = vadd.f32 %v914, %v1027
  %1045 = vmatprep.subr.mxu0 %v207
  %1046 = vmatpush1.msra.mxu0 %v206
  %1047 = vmatprep.subr.mxu0 %v209
  %1048 = vmatpush1.msra.mxu0 %v208
  %1049 = vmatprep.subr.mxu0 %v211
  %1050 = vmatpush1.msra.mxu0 %v210
  %1051 = vmatprep.subr.mxu0 %v213
  %1052 = vmatpush1.msra.mxu0 %v212
  %1053 = vmatprep.subr.mxu0 %v215
  %1054 = vmatpush1.msra.mxu0 %v214
  %1055 = vmatprep.subr.mxu0 %v217
  %1056 = vmatpush1.msra.mxu0 %v216
  %1057 = vmatprep.subr.mxu0 %v219
  %1058 = vmatpush1.msra.mxu0 %v218
  %1059 = vmatprep.subr.mxu0 %v221
  %1060 = vmatpush1.msra.mxu0 %v220
  %1061 = vmatprep.subr.mxu0 %v223
  %1062 = vmatpush1.msra.mxu0 %v222
  %1063 = vmatprep.subr.mxu0 %v225
  %1064 = vmatpush1.msra.mxu0 %v224
  %1065 = vmatprep.subr.mxu0 %v227
  %1066 = vmatpush1.msra.mxu0 %v226
  %1067 = vmatprep.subr.mxu0 %v229
  %1068 = vmatpush1.msra.mxu0 %v228
  %1069 = vmatprep.subr.mxu0 %v231
  %1070 = vmatpush1.msra.mxu0 %v230
  %1071 = vmatprep.subr.mxu0 %v233
  %1072 = vmatpush1.msra.mxu0 %v232
  %1073 = vmatprep.subr.mxu0 %v235
  %1074 = vmatpush1.msra.mxu0 %v234
  %1075 = vmatprep.subr.mxu0 %v237
  %1076 = vmatpush1.msra.mxu0 %v236
  %1077 = vmatprep.subr.mxu0 0.0
  %1078 = vmatpush1.msra.mxu0 0.0
  %1079 = vmatprep.subr.mxu0 0.0
  %1080 = vmatpush1.msra.mxu0 0.0
  %1081 = vmatprep.subr.mxu0 0.0
  %1082 = vmatpush1.msra.mxu0 0.0
  %1083 = vmatprep.subr.mxu0 0.0
  %1084 = vmatpush1.msra.mxu0 0.0
  %1085 = vmatprep.subr.mxu0 0.0
  %1086 = vmatpush1.msra.mxu0 0.0
  %1087 = vmatprep.subr.mxu0 0.0
  %1088 = vmatpush1.msra.mxu0 0.0
  %1089 = vmatprep.subr.mxu0 0.0
  %1090 = vmatpush1.msra.mxu0 0.0
  %1091 = vmatprep.subr.mxu0 0.0
  %1092 = vmatpush1.msra.mxu0 0.0
  %1093 = vmatprep.subr.mxu0 0.0
  %1094 = vmatpush1.msra.mxu0 0.0
  %1095 = vmatprep.subr.mxu0 0.0
  %1096 = vmatpush1.msra.mxu0 0.0
  %1097 = vmatprep.subr.mxu0 0.0
  %1098 = vmatpush1.msra.mxu0 0.0
  %1099 = vmatprep.subr.mxu0 0.0
  %1100 = vmatpush1.msra.mxu0 0.0
  %1101 = vmatprep.subr.mxu0 0.0
  %1102 = vmatpush1.msra.mxu0 0.0
  %1103 = vmatprep.subr.mxu0 0.0
  %1104 = vmatpush1.msra.mxu0 0.0
  %1105 = vmatprep.subr.mxu0 0.0
  %1106 = vmatpush1.msra.mxu0 0.0
  %1107 = vmatprep.subr.mxu0 0.0
  %1108 = vmatpush1.msra.mxu0 0.0
  %1109 = vmatprep.mubr.f32.mxu0 0.0
  %1110 = vmatmul.mubr.f32.gmra.mrb[0].mxu0 %v681
  %v1111 = vpop.f32.mrb[0].mxu0
  %v1112 = vadd.f32 0.0, %v1111
  %v1113 = vpop.f32.mrb[0].mxu0
  %v1114 = vadd.f32 0.0, %v1113
  %1115 = vmatprep.mubr.f32.mxu0 0.0
  %1116 = vmatmul.mubr.f32.gmra.mrb[0].mxu0 %v682
  %v1117 = vpop.f32.mrb[0].mxu0
  %v1118 = vadd.f32 0.0, %v1117
  %v1119 = vpop.f32.mrb[0].mxu0
  %v1120 = vadd.f32 0.0, %v1119
  %1121 = vmatprep.mubr.f32.mxu0 0.0
  %1122 = vmatmul.mubr.f32.gmra.mrb[0].mxu0 %v683
  %v1123 = vpop.f32.mrb[0].mxu0
  %v1124 = vadd.f32 0.0, %v1123
  %v1125 = vpop.f32.mrb[0].mxu0
  %v1126 = vadd.f32 0.0, %v1125
  %1127 = vmatprep.mubr.f32.mxu0 0.0
  %1128 = vmatmul.mubr.f32.gmra.mrb[0].mxu0 %v684
  %v1129 = vpop.f32.mrb[0].mxu0
  %v1130 = vadd.f32 0.0, %v1129
  %v1131 = vpop.f32.mrb[0].mxu0
  %v1132 = vadd.f32 0.0, %v1131
  %1133 = vmatprep.mubr.f32.mxu0 0.0
  %1134 = vmatmul.mubr.f32.gmra.mrb[0].mxu0 %v685
  %v1135 = vpop.f32.mrb[0].mxu0
  %v1136 = vadd.f32 0.0, %v1135
  %v1137 = vpop.f32.mrb[0].mxu0
  %v1138 = vadd.f32 0.0, %v1137
  %1139 = vmatprep.mubr.f32.mxu0 0.0
  %1140 = vmatmul.mubr.f32.gmra.mrb[0].mxu0 %v686
  %v1141 = vpop.f32.mrb[0].mxu0
  %v1142 = vadd.f32 0.0, %v1141
  %v1143 = vpop.f32.mrb[0].mxu0
  %v1144 = vadd.f32 0.0, %v1143
  %1145 = vmatprep.mubr.f32.mxu0 0.0
  %1146 = vmatmul.mubr.f32.gmra.mrb[0].mxu0 %v687
  %v1147 = vpop.f32.mrb[0].mxu0
  %v1148 = vadd.f32 0.0, %v1147
  %v1149 = vpop.f32.mrb[0].mxu0
  %v1150 = vadd.f32 0.0, %v1149
  %1151 = vmatprep.mubr.f32.mxu0 0.0
  %1152 = vmatmul.mubr.f32.gmra.mrb[0].mxu0 %v688
  %v1153 = vpop.f32.mrb[0].mxu0
  %v1154 = vadd.f32 0.0, %v1153
  %v1155 = vpop.f32.mrb[0].mxu0
  %v1156 = vadd.f32 0.0, %v1155
  %1157 = vdwg.mxu0
  %v1158 = vadd.f32 %v1029, %v1112
  %v1159 = vadd.f32 %v1030, %v1114
  %v1160 = vadd.f32 %v1031, %v1118
  %v1161 = vadd.f32 %v1032, %v1120
  %v1162 = vadd.f32 %v1033, %v1124
  %v1163 = vadd.f32 %v1034, %v1126
  %v1164 = vadd.f32 %v1035, %v1130
  %v1165 = vadd.f32 %v1036, %v1132
  %v1166 = vadd.f32 %v1037, %v1136
  %v1167 = vadd.f32 %v1038, %v1138
  %v1168 = vadd.f32 %v1039, %v1142
  %v1169 = vadd.f32 %v1040, %v1144
  %v1170 = vadd.f32 %v1041, %v1148
  %v1171 = vadd.f32 %v1042, %v1150
  %v1172 = vadd.f32 %v1043, %v1154
  %v1173 = vadd.f32 %v1044, %v1156
  %1174 = vmatprep.subr.mxu0 %v239
  %1175 = vmatpush1.msra.mxu0 %v238
  %1176 = vmatprep.subr.mxu0 %v241
  %1177 = vmatpush1.msra.mxu0 %v240
  %1178 = vmatprep.subr.mxu0 %v243
  %1179 = vmatpush1.msra.mxu0 %v242
  %1180 = vmatprep.subr.mxu0 %v245
  %1181 = vmatpush1.msra.mxu0 %v244
  %1182 = vmatprep.subr.mxu0 %v247
  %1183 = vmatpush1.msra.mxu0 %v246
  %1184 = vmatprep.subr.mxu0 %v249
  %1185 = vmatpush1.msra.mxu0 %v248
  %1186 = vmatprep.subr.mxu0 %v251
  %1187 = vmatpush1.msra.mxu0 %v250
  %1188 = vmatprep.subr.mxu0 %v253
  %1189 = vmatpush1.msra.mxu0 %v252
  %1190 = vmatprep.subr.mxu0 %v255
  %1191 = vmatpush1.msra.mxu0 %v254
  %1192 = vmatprep.subr.mxu0 %v257
  %1193 = vmatpush1.msra.mxu0 %v256
  %1194 = vmatprep.subr.mxu0 %v259
  %1195 = vmatpush1.msra.mxu0 %v258
  %1196 = vmatprep.subr.mxu0 %v261
  %1197 = vmatpush1.msra.mxu0 %v260
  %1198 = vmatprep.subr.mxu0 %v263
  %1199 = vmatpush1.msra.mxu0 %v262
  %1200 = vmatprep.subr.mxu0 %v265
  %1201 = vmatpush1.msra.mxu0 %v264
  %1202 = vmatprep.subr.mxu0 %v267
  %1203 = vmatpush1.msra.mxu0 %v266
  %1204 = vmatprep.subr.mxu0 %v269
  %1205 = vmatpush1.msra.mxu0 %v268
  %1206 = vmatprep.subr.mxu0 0.0
  %1207 = vmatpush1.msra.mxu0 0.0
  %1208 = vmatprep.subr.mxu0 0.0
  %1209 = vmatpush1.msra.mxu0 0.0
  %1210 = vmatprep.subr.mxu0 0.0
  %1211 = vmatpush1.msra.mxu0 0.0
  %1212 = vmatprep.subr.mxu0 0.0
  %1213 = vmatpush1.msra.mxu0 0.0
  %1214 = vmatprep.subr.mxu0 0.0
  %1215 = vmatpush1.msra.mxu0 0.0
  %1216 = vmatprep.subr.mxu0 0.0
  %1217 = vmatpush1.msra.mxu0 0.0
  %1218 = vmatprep.subr.mxu0 0.0
  %1219 = vmatpush1.msra.mxu0 0.0
  %1220 = vmatprep.subr.mxu0 0.0
  %1221 = vmatpush1.msra.mxu0 0.0
  %1222 = vmatprep.subr.mxu0 0.0
  %1223 = vmatpush1.msra.mxu0 0.0
  %1224 = vmatprep.subr.mxu0 0.0
  %1225 = vmatpush1.msra.mxu0 0.0
  %1226 = vmatprep.subr.mxu0 0.0
  %1227 = vmatpush1.msra.mxu0 0.0
  %1228 = vmatprep.subr.mxu0 0.0
  %1229 = vmatpush1.msra.mxu0 0.0
  %1230 = vmatprep.subr.mxu0 0.0
  %1231 = vmatpush1.msra.mxu0 0.0
  %1232 = vmatprep.subr.mxu0 0.0
  %1233 = vmatpush1.msra.mxu0 0.0
  %1234 = vmatprep.subr.mxu0 0.0
  %1235 = vmatpush1.msra.mxu0 0.0
  %1236 = vmatprep.subr.mxu0 0.0
  %1237 = vmatpush1.msra.mxu0 0.0
  %1238 = vmatprep.mubr.f32.mxu0 0.0
  %1239 = vmatmul.mubr.f32.gmra.mrb[0].mxu0 %v682
  %v1240 = vpop.f32.mrb[0].mxu0
  %v1241 = vadd.f32 0.0, %v1240
  %v1242 = vpop.f32.mrb[0].mxu0
  %v1243 = vadd.f32 0.0, %v1242
  %1244 = vmatprep.mubr.f32.mxu0 0.0
  %1245 = vmatmul.mubr.f32.gmra.mrb[0].mxu0 %v683
  %v1246 = vpop.f32.mrb[0].mxu0
  %v1247 = vadd.f32 0.0, %v1246
  %v1248 = vpop.f32.mrb[0].mxu0
  %v1249 = vadd.f32 0.0, %v1248
  %1250 = vmatprep.mubr.f32.mxu0 0.0
  %1251 = vmatmul.mubr.f32.gmra.mrb[0].mxu0 %v684
  %v1252 = vpop.f32.mrb[0].mxu0
  %v1253 = vadd.f32 0.0, %v1252
  %v1254 = vpop.f32.mrb[0].mxu0
  %v1255 = vadd.f32 0.0, %v1254
  %1256 = vmatprep.mubr.f32.mxu0 0.0
  %1257 = vmatmul.mubr.f32.gmra.mrb[0].mxu0 %v685
  %v1258 = vpop.f32.mrb[0].mxu0
  %v1259 = vadd.f32 0.0, %v1258
  %v1260 = vpop.f32.mrb[0].mxu0
  %v1261 = vadd.f32 0.0, %v1260
  %1262 = vmatprep.mubr.f32.mxu0 0.0
  %1263 = vmatmul.mubr.f32.gmra.mrb[0].mxu0 %v686
  %v1264 = vpop.f32.mrb[0].mxu0
  %v1265 = vadd.f32 0.0, %v1264
  %v1266 = vpop.f32.mrb[0].mxu0
  %v1267 = vadd.f32 0.0, %v1266
  %1268 = vmatprep.mubr.f32.mxu0 0.0
  %1269 = vmatmul.mubr.f32.gmra.mrb[0].mxu0 %v687
  %v1270 = vpop.f32.mrb[0].mxu0
  %v1271 = vadd.f32 0.0, %v1270
  %v1272 = vpop.f32.mrb[0].mxu0
  %v1273 = vadd.f32 0.0, %v1272
  %1274 = vmatprep.mubr.f32.mxu0 0.0
  %1275 = vmatmul.mubr.f32.gmra.mrb[0].mxu0 %v688
  %v1276 = vpop.f32.mrb[0].mxu0
  %v1277 = vadd.f32 0.0, %v1276
  %v1278 = vpop.f32.mrb[0].mxu0
  %v1279 = vadd.f32 0.0, %v1278
  %1280 = vmatprep.mubr.f32.mxu0 0.0
  %1281 = vmatmul.mubr.f32.gmra.mrb[0].mxu0 %v689
  %v1282 = vpop.f32.mrb[0].mxu0
  %v1283 = vadd.f32 0.0, %v1282
  %v1284 = vpop.f32.mrb[0].mxu0
  %v1285 = vadd.f32 0.0, %v1284
  %1286 = vdwg.mxu0
  %v1287 = vadd.f32 %v1158, %v1241
  %v1288 = vadd.f32 %v1159, %v1243
  %v1289 = vadd.f32 %v1160, %v1247
  %v1290 = vadd.f32 %v1161, %v1249
  %v1291 = vadd.f32 %v1162, %v1253
  %v1292 = vadd.f32 %v1163, %v1255
  %v1293 = vadd.f32 %v1164, %v1259
  %v1294 = vadd.f32 %v1165, %v1261
  %v1295 = vadd.f32 %v1166, %v1265
  %v1296 = vadd.f32 %v1167, %v1267
  %v1297 = vadd.f32 %v1168, %v1271
  %v1298 = vadd.f32 %v1169, %v1273
  %v1299 = vadd.f32 %v1170, %v1277
  %v1300 = vadd.f32 %v1171, %v1279
  %v1301 = vadd.f32 %v1172, %v1283
  %v1302 = vadd.f32 %v1173, %v1285
  %v1303 = vmax.f32 %v1287, %v1289
  %v1304 = vmax.f32 %v1288, %v1290
  %v1305 = vmax.f32 %v1291, %v1293
  %v1306 = vmax.f32 %v1292, %v1294
  %v1307 = vmax.f32 %v1295, %v1297
  %v1308 = vmax.f32 %v1296, %v1298
  %v1309 = vmax.f32 %v1299, %v1301
  %v1310 = vmax.f32 %v1300, %v1302
  %v1311 = vmax.f32 %v1303, %v1304
  %v1312 = vmax.f32 %v1305, %v1306
  %v1313 = vmax.f32 %v1307, %v1308
  %v1314 = vmax.f32 %v1309, %v1310
  %v1315 = vld [vmem:[%s4] sm:$0x1]
  %v1317 = vlaneseq
  %v1318 = vshrl.u32 %v1317, 7
  %v1319 = vsub.s32 0, %v1318
  %v1320 = vrot.slane %v1315, %v1319
  %v1322 = vadd.f32 %v1311, %v1320
  %v1323 = vadd.f32 %v1312, %v1320
  %v1324 = vadd.f32 %v1313, %v1320
  %v1325 = vadd.f32 %v1314, %v1320
  %v1326 = vmax.f32 %v1322, 0.0
  %v1327 = vmax.f32 %v1323, 0.0
  %v1328 = vmax.f32 %v1324, 0.0
  %v1329 = vmax.f32 %v1325, 0.0
  %1330 = vmatprep.subr.mxu0 0.0
  %1331 = vmatpush1.msra.mxu0 %v286
  %1332 = vmatprep.subr.mxu0 0.0
  %1333 = vmatpush1.msra.mxu0 %v287
  %1334 = vmatprep.subr.mxu0 0.0
  %1335 = vmatpush1.msra.mxu0 %v288
  %1336 = vmatprep.subr.mxu0 0.0
  %1337 = vmatpush1.msra.mxu0 %v289
  %1338 = vmatprep.subr.mxu0 0.0
  %1339 = vmatpush1.msra.mxu0 %v290
  %1340 = vmatprep.subr.mxu0 0.0
  %1341 = vmatpush1.msra.mxu0 %v291
  %1342 = vmatprep.subr.mxu0 0.0
  %1343 = vmatpush1.msra.mxu0 %v292
  %1344 = vmatprep.subr.mxu0 0.0
  %1345 = vmatpush1.msra.mxu0 %v293
  %1346 = vmatprep.subr.mxu0 0.0
  %1347 = vmatpush1.msra.mxu0 %v294
  %1348 = vmatprep.subr.mxu0 0.0
  %1349 = vmatpush1.msra.mxu0 %v295
  %1350 = vmatprep.subr.mxu0 0.0
  %1351 = vmatpush1.msra.mxu0 %v296
  %1352 = vmatprep.subr.mxu0 0.0
  %1353 = vmatpush1.msra.mxu0 %v297
  %1354 = vmatprep.subr.mxu0 0.0
  %1355 = vmatpush1.msra.mxu0 %v298
  %1356 = vmatprep.subr.mxu0 0.0
  %1357 = vmatpush1.msra.mxu0 %v299
  %1358 = vmatprep.subr.mxu0 0.0
  %1359 = vmatpush1.msra.mxu0 %v300
  %1360 = vmatprep.subr.mxu0 0.0
  %1361 = vmatpush1.msra.mxu0 %v301
  %1362 = vmatprep.subr.mxu0 0.0
  %1363 = vmatpush1.msra.mxu0 0.0
  %1364 = vmatprep.subr.mxu0 0.0
  %1365 = vmatpush1.msra.mxu0 0.0
  %1366 = vmatprep.subr.mxu0 0.0
  %1367 = vmatpush1.msra.mxu0 0.0
  %1368 = vmatprep.subr.mxu0 0.0
  %1369 = vmatpush1.msra.mxu0 0.0
  %1370 = vmatprep.subr.mxu0 0.0
  %1371 = vmatpush1.msra.mxu0 0.0
  %1372 = vmatprep.subr.mxu0 0.0
  %1373 = vmatpush1.msra.mxu0 0.0
  %1374 = vmatprep.subr.mxu0 0.0
  %1375 = vmatpush1.msra.mxu0 0.0
  %1376 = vmatprep.subr.mxu0 0.0
  %1377 = vmatpush1.msra.mxu0 0.0
  %1378 = vmatprep.subr.mxu0 0.0
  %1379 = vmatpush1.msra.mxu0 0.0
  %1380 = vmatprep.subr.mxu0 0.0
  %1381 = vmatpush1.msra.mxu0 0.0
  %1382 = vmatprep.subr.mxu0 0.0
  %1383 = vmatpush1.msra.mxu0 0.0
  %1384 = vmatprep.subr.mxu0 0.0
  %1385 = vmatpush1.msra.mxu0 0.0
  %1386 = vmatprep.subr.mxu0 0.0
  %1387 = vmatpush1.msra.mxu0 0.0
  %1388 = vmatprep.subr.mxu0 0.0
  %1389 = vmatpush1.msra.mxu0 0.0
  %1390 = vmatprep.subr.mxu0 0.0
  %1391 = vmatpush1.msra.mxu0 0.0
  %1392 = vmatprep.subr.mxu0 0.0
  %1393 = vmatpush1.msra.mxu0 0.0
  %1394 = vmatprep.mubr.f32.mxu0 0.0
  %1395 = vmatmul.mubr.f32.gmra.mrb[0].mxu0 %v1327
  %v1396 = vpop.f32.mrb[0].mxu0
  %v1397 = vadd.f32 0.0, %v1396
  %v1398 = vpop.f32.mrb[0].mxu0
  %1399 = vdwg.mxu0
  %1400 = vmatprep.subr.mxu0 0.0
  %1401 = vmatpush1.msra.mxu0 %v270
  %1402 = vmatprep.subr.mxu0 0.0
  %1403 = vmatpush1.msra.mxu0 %v271
  %1404 = vmatprep.subr.mxu0 0.0
  %1405 = vmatpush1.msra.mxu0 %v272
  %1406 = vmatprep.subr.mxu0 0.0
  %1407 = vmatpush1.msra.mxu0 %v273
  %1408 = vmatprep.subr.mxu0 0.0
  %1409 = vmatpush1.msra.mxu0 %v274
  %1410 = vmatprep.subr.mxu0 0.0
  %1411 = vmatpush1.msra.mxu0 %v275
  %1412 = vmatprep.subr.mxu0 0.0
  %1413 = vmatpush1.msra.mxu0 %v276
  %1414 = vmatprep.subr.mxu0 0.0
  %1415 = vmatpush1.msra.mxu0 %v277
  %1416 = vmatprep.subr.mxu0 0.0
  %1417 = vmatpush1.msra.mxu0 %v278
  %1418 = vmatprep.subr.mxu0 0.0
  %1419 = vmatpush1.msra.mxu0 %v279
  %1420 = vmatprep.subr.mxu0 0.0
  %1421 = vmatpush1.msra.mxu0 %v280
  %1422 = vmatprep.subr.mxu0 0.0
  %1423 = vmatpush1.msra.mxu0 %v281
  %1424 = vmatprep.subr.mxu0 0.0
  %1425 = vmatpush1.msra.mxu0 %v282
  %1426 = vmatprep.subr.mxu0 0.0
  %1427 = vmatpush1.msra.mxu0 %v283
  %1428 = vmatprep.subr.mxu0 0.0
  %1429 = vmatpush1.msra.mxu0 %v284
  %1430 = vmatprep.subr.mxu0 0.0
  %1431 = vmatpush1.msra.mxu0 %v285
  %1432 = vmatprep.subr.mxu0 0.0
  %1433 = vmatpush1.msra.mxu0 0.0
  %1434 = vmatprep.subr.mxu0 0.0
  %1435 = vmatpush1.msra.mxu0 0.0
  %1436 = vmatprep.subr.mxu0 0.0
  %1437 = vmatpush1.msra.mxu0 0.0
  %1438 = vmatprep.subr.mxu0 0.0
  %1439 = vmatpush1.msra.mxu0 0.0
  %1440 = vmatprep.subr.mxu0 0.0
  %1441 = vmatpush1.msra.mxu0 0.0
  %1442 = vmatprep.subr.mxu0 0.0
  %1443 = vmatpush1.msra.mxu0 0.0
  %1444 = vmatprep.subr.mxu0 0.0
  %1445 = vmatpush1.msra.mxu0 0.0
  %1446 = vmatprep.subr.mxu0 0.0
  %1447 = vmatpush1.msra.mxu0 0.0
  %1448 = vmatprep.subr.mxu0 0.0
  %1449 = vmatpush1.msra.mxu0 0.0
  %1450 = vmatprep.subr.mxu0 0.0
  %1451 = vmatpush1.msra.mxu0 0.0
  %1452 = vmatprep.subr.mxu0 0.0
  %1453 = vmatpush1.msra.mxu0 0.0
  %1454 = vmatprep.subr.mxu0 0.0
  %1455 = vmatpush1.msra.mxu0 0.0
  %1456 = vmatprep.subr.mxu0 0.0
  %1457 = vmatpush1.msra.mxu0 0.0
  %1458 = vmatprep.subr.mxu0 0.0
  %1459 = vmatpush1.msra.mxu0 0.0
  %1460 = vmatprep.subr.mxu0 0.0
  %1461 = vmatpush1.msra.mxu0 0.0
  %1462 = vmatprep.subr.mxu0 0.0
  %1463 = vmatpush1.msra.mxu0 0.0
  %1464 = vmatprep.mubr.f32.mxu0 0.0
  %1465 = vmatmul.mubr.f32.gmra.mrb[0].mxu0 %v1326
  %v1466 = vpop.f32.mrb[0].mxu0
  %v1467 = vadd.f32 %v1397, %v1466
  %v1468 = vpop.f32.mrb[0].mxu0
  %1469 = vdwg.mxu0
  %1470 = vmatprep.subr.mxu0 0.0
  %1471 = vmatpush1.msra.mxu0 %v302
  %1472 = vmatprep.subr.mxu0 0.0
  %1473 = vmatpush1.msra.mxu0 %v303
  %1474 = vmatprep.subr.mxu0 0.0
  %1475 = vmatpush1.msra.mxu0 %v304
  %1476 = vmatprep.subr.mxu0 0.0
  %1477 = vmatpush1.msra.mxu0 %v305
  %1478 = vmatprep.subr.mxu0 0.0
  %1479 = vmatpush1.msra.mxu0 %v306
  %1480 = vmatprep.subr.mxu0 0.0
  %1481 = vmatpush1.msra.mxu0 %v307
  %1482 = vmatprep.subr.mxu0 0.0
  %1483 = vmatpush1.msra.mxu0 %v308
  %1484 = vmatprep.subr.mxu0 0.0
  %1485 = vmatpush1.msra.mxu0 %v309
  %1486 = vmatprep.subr.mxu0 0.0
  %1487 = vmatpush1.msra.mxu0 %v310
  %1488 = vmatprep.subr.mxu0 0.0
  %1489 = vmatpush1.msra.mxu0 %v311
  %1490 = vmatprep.subr.mxu0 0.0
  %1491 = vmatpush1.msra.mxu0 %v312
  %1492 = vmatprep.subr.mxu0 0.0
  %1493 = vmatpush1.msra.mxu0 %v313
  %1494 = vmatprep.subr.mxu0 0.0
  %1495 = vmatpush1.msra.mxu0 %v314
  %1496 = vmatprep.subr.mxu0 0.0
  %1497 = vmatpush1.msra.mxu0 %v315
  %1498 = vmatprep.subr.mxu0 0.0
  %1499 = vmatpush1.msra.mxu0 %v316
  %1500 = vmatprep.subr.mxu0 0.0
  %1501 = vmatpush1.msra.mxu0 %v317
  %1502 = vmatprep.subr.mxu0 0.0
  %1503 = vmatpush1.msra.mxu0 0.0
  %1504 = vmatprep.subr.mxu0 0.0
  %1505 = vmatpush1.msra.mxu0 0.0
  %1506 = vmatprep.subr.mxu0 0.0
  %1507 = vmatpush1.msra.mxu0 0.0
  %1508 = vmatprep.subr.mxu0 0.0
  %1509 = vmatpush1.msra.mxu0 0.0
  %1510 = vmatprep.subr.mxu0 0.0
  %1511 = vmatpush1.msra.mxu0 0.0
  %1512 = vmatprep.subr.mxu0 0.0
  %1513 = vmatpush1.msra.mxu0 0.0
  %1514 = vmatprep.subr.mxu0 0.0
  %1515 = vmatpush1.msra.mxu0 0.0
  %1516 = vmatprep.subr.mxu0 0.0
  %1517 = vmatpush1.msra.mxu0 0.0
  %1518 = vmatprep.subr.mxu0 0.0
  %1519 = vmatpush1.msra.mxu0 0.0
  %1520 = vmatprep.subr.mxu0 0.0
  %1521 = vmatpush1.msra.mxu0 0.0
  %1522 = vmatprep.subr.mxu0 0.0
  %1523 = vmatpush1.msra.mxu0 0.0
  %1524 = vmatprep.subr.mxu0 0.0
  %1525 = vmatpush1.msra.mxu0 0.0
  %1526 = vmatprep.subr.mxu0 0.0
  %1527 = vmatpush1.msra.mxu0 0.0
  %1528 = vmatprep.subr.mxu0 0.0
  %1529 = vmatpush1.msra.mxu0 0.0
  %1530 = vmatprep.subr.mxu0 0.0
  %1531 = vmatpush1.msra.mxu0 0.0
  %1532 = vmatprep.subr.mxu0 0.0
  %1533 = vmatpush1.msra.mxu0 0.0
  %1534 = vmatprep.mubr.f32.mxu0 0.0
  %1535 = vmatmul.mubr.f32.gmra.mrb[0].mxu0 %v1328
  %v1536 = vpop.f32.mrb[0].mxu0
  %v1537 = vadd.f32 0.0, %v1536
  %v1538 = vpop.f32.mrb[0].mxu0
  %1539 = vdwg.mxu0
  %v1540 = vadd.f32 %v1467, %v1537
  %1541 = vmatprep.subr.mxu0 0.0
  %1542 = vmatpush1.msra.mxu0 %v318
  %1543 = vmatprep.subr.mxu0 0.0
  %1544 = vmatpush1.msra.mxu0 %v319
  %1545 = vmatprep.subr.mxu0 0.0
  %1546 = vmatpush1.msra.mxu0 %v320
  %1547 = vmatprep.subr.mxu0 0.0
  %1548 = vmatpush1.msra.mxu0 %v321
  %1549 = vmatprep.subr.mxu0 0.0
  %1550 = vmatpush1.msra.mxu0 %v322
  %1551 = vmatprep.subr.mxu0 0.0
  %1552 = vmatpush1.msra.mxu0 %v323
  %1553 = vmatprep.subr.mxu0 0.0
  %1554 = vmatpush1.msra.mxu0 %v324
  %1555 = vmatprep.subr.mxu0 0.0
  %1556 = vmatpush1.msra.mxu0 %v325
  %1557 = vmatprep.subr.mxu0 0.0
  %1558 = vmatpush1.msra.mxu0 %v326
  %1559 = vmatprep.subr.mxu0 0.0
  %1560 = vmatpush1.msra.mxu0 %v327
  %1561 = vmatprep.subr.mxu0 0.0
  %1562 = vmatpush1.msra.mxu0 %v328
  %1563 = vmatprep.subr.mxu0 0.0
  %1564 = vmatpush1.msra.mxu0 %v329
  %1565 = vmatprep.subr.mxu0 0.0
  %1566 = vmatpush1.msra.mxu0 %v330
  %1567 = vmatprep.subr.mxu0 0.0
  %1568 = vmatpush1.msra.mxu0 %v331
  %1569 = vmatprep.subr.mxu0 0.0
  %1570 = vmatpush1.msra.mxu0 %v332
  %1571 = vmatprep.subr.mxu0 0.0
  %1572 = vmatpush1.msra.mxu0 %v333
  %1573 = vmatprep.subr.mxu0 0.0
  %1574 = vmatpush1.msra.mxu0 0.0
  %1575 = vmatprep.subr.mxu0 0.0
  %1576 = vmatpush1.msra.mxu0 0.0
  %1577 = vmatprep.subr.mxu0 0.0
  %1578 = vmatpush1.msra.mxu0 0.0
  %1579 = vmatprep.subr.mxu0 0.0
  %1580 = vmatpush1.msra.mxu0 0.0
  %1581 = vmatprep.subr.mxu0 0.0
  %1582 = vmatpush1.msra.mxu0 0.0
  %1583 = vmatprep.subr.mxu0 0.0
  %1584 = vmatpush1.msra.mxu0 0.0
  %1585 = vmatprep.subr.mxu0 0.0
  %1586 = vmatpush1.msra.mxu0 0.0
  %1587 = vmatprep.subr.mxu0 0.0
  %1588 = vmatpush1.msra.mxu0 0.0
  %1589 = vmatprep.subr.mxu0 0.0
  %1590 = vmatpush1.msra.mxu0 0.0
  %1591 = vmatprep.subr.mxu0 0.0
  %1592 = vmatpush1.msra.mxu0 0.0
  %1593 = vmatprep.subr.mxu0 0.0
  %1594 = vmatpush1.msra.mxu0 0.0
  %1595 = vmatprep.subr.mxu0 0.0
  %1596 = vmatpush1.msra.mxu0 0.0
  %1597 = vmatprep.subr.mxu0 0.0
  %1598 = vmatpush1.msra.mxu0 0.0
  %1599 = vmatprep.subr.mxu0 0.0
  %1600 = vmatpush1.msra.mxu0 0.0
  %1601 = vmatprep.subr.mxu0 0.0
  %1602 = vmatpush1.msra.mxu0 0.0
  %1603 = vmatprep.subr.mxu0 0.0
  %1604 = vmatpush1.msra.mxu0 0.0
  %1605 = vmatprep.mubr.f32.mxu0 0.0
  %1606 = vmatmul.mubr.f32.gmra.mrb[0].mxu0 %v1329
  %v1607 = vpop.f32.mrb[0].mxu0
  %v1608 = vadd.f32 0.0, %v1607
  %v1609 = vpop.f32.mrb[0].mxu0
  %1610 = vdwg.mxu0
  %v1611 = vadd.f32 %v1540, %v1608
  %v1612 = vld [vmem:[%s6] sm:$0x1]
  %v1614 = vlaneseq
  %v1615 = vshrl.u32 %v1614, 7
  %v1616 = vsub.s32 0, %v1615
  %v1617 = vrot.slane %v1612, %v1616
  %v1619 = vadd.f32 %v1611, %v1617
  %1620 = vmax.xlane.f32.xlu0 %v1619
  %v1621 = vpop.xlane.xlu0 %1620
  %v1622 = vsub.f32 %v1619, %v1621
  %v1623 = vmul.f32 %v1622, 1.442695
  %v1624 = vpow.pop %v1623
  %1625 = vadd.xlane.f32.xlu0 %v1624
  %v1626 = vpop.xlane.xlu0 %1625
  %v1627 = vlog2.pop %v1626
  %v1628 = vmul.f32 %v1627, 0.6931472
  %v1629 = vsub.f32 %v1622, %v1628
  %1630 = vst [vmem:[%s7] sm:$0xff] %v1629
  // Predicated region
  $region30: #{net_forward.1} parent=0 // pred_check
    _
  $region31: #{net_forward.1} parent=0 // pred_check_branch
    %1632 = sbr.rel (0) target = $region33
  $region32: #{net_forward.1} parent=0 // pred_region
    _
  $region33: #{net_forward.1} parent=0 // pred_fallthru
    _
  // Predicated region
  $region34: #{net_forward.1} parent=0 // pred_check
    _
  $region35: #{net_forward.1} parent=0 // pred_check_branch
    %1634 = sbr.rel (0) target = $region37
  $region36: #{net_forward.1} parent=0 // pred_region
    _
  $region37: #{net_forward.1} parent=0 // pred_fallthru
    _

</llo_original>
